<compile_context>
chip_gen: v7x
topology: tpu7x:2x2x1
jax: 0.10.0
libtpu: 0.0.40
codegen_flags: <defaults>
</compile_context>

<pallas_src>
import jax
import jax.numpy as jnp
import numpy as np
from jax import lax
from jax.experimental import pallas as pl
from jax.experimental.pallas import tpu as pltpu


# ----------------------------- fused kernel -------------------------------- #

def _down_fused_kernel(x_ref, w1_ref, b1_ref, w2t_ref, b2_ref, o_ref,
                       p1_ref, xs1_ref, p2_ref, xs2_ref):
    # x_ref  : (1, Hh, 2, Wh, 2*Cin)  input, 2x2 pool taps exposed by a free reshape
    # w1_ref : (9*Cin, Cmid)          conv1 weights (im2col rows = (kh,kw,cin)), *0.25 folded
    # b1_ref : (1, Cmid)
    # w2t_ref: (Cout, 9*Cmid)         conv2 weights, transposed im2col layout
    # b2_ref : (Cout, 1)
    # o_ref  : (1, Cout, Hh*Wh)       channel-major flat output (NCHW after wrapper reshape)
    # scratch:
    # p1_ref : (Hh+2, Wh+2, Cin)      zero-padded pooled activation (VMEM)
    # xs1_ref: (Hh*Wh, 9*Cin)         im2col matrix for conv1 (VMEM)
    # p2_ref : (Hh+2, Wh+2, Cmid)     zero-padded conv1 activation (VMEM)
    # xs2_ref: (Hh*Wh, 9*Cmid)        im2col matrix for conv2 (VMEM)
    _, hh, _, wh, c2 = x_ref.shape
    cin = c2 // 2
    cmid = p2_ref.shape[-1]
    hw = hh * wh

    sqrt_half = jnp.float32(0.7071067811865475)

    def gelu(v):  # exact (erf) GELU, matches torch.nn.GELU default
        return 0.5 * v * (1.0 + lax.erf(v * sqrt_half))

    # ---- 2x2 average pool: sum of 4 taps (the 1/4 scale lives in w1) ----
    xh = x_ref[0, :, 0] + x_ref[0, :, 1]          # (Hh, Wh, 2*Cin): h-pairs summed
    pooled = xh[:, :, :cin] + xh[:, :, cin:]      # (Hh, Wh, Cin):   w-pairs summed

    # ---- conv1 (3x3, SAME): pad in VMEM, im2col, one MXU matmul, GELU ----
    p1_ref[...] = jnp.zeros_like(p1_ref)
    p1_ref[1:hh + 1, 1:wh + 1, :] = pooled
    for t in range(9):
        kh, kw = divmod(t, 3)
        slab = p1_ref[kh:kh + hh, kw:kw + wh, :]          # (Hh, Wh, Cin)
        xs1_ref[:, t * cin:(t + 1) * cin] = slab.reshape(hw, cin)
    a1 = jnp.dot(xs1_ref[...], w1_ref[...], preferred_element_type=jnp.float32)
    a1 = gelu(a1 + b1_ref[...])                           # (Hh*Wh, Cmid)

    # ---- conv2 (3x3, SAME): same scheme, output produced channel-major ----
    p2_ref[...] = jnp.zeros_like(p2_ref)
    p2_ref[1:hh + 1, 1:wh + 1, :] = a1.reshape(hh, wh, cmid)
    for t in range(9):
        kh, kw = divmod(t, 3)
        slab = p2_ref[kh:kh + hh, kw:kw + wh, :]          # (Hh, Wh, Cmid)
        xs2_ref[:, t * cmid:(t + 1) * cmid] = slab.reshape(hw, cmid)
    # (Cout, 9*Cmid) contracted with (Hh*Wh, 9*Cmid) on the last dim -> (Cout, Hh*Wh)
    a2 = lax.dot_general(w2t_ref[...], xs2_ref[...],
                         (((1,), (1,)), ((), ())),
                         preferred_element_type=jnp.float32)
    y = gelu(a2 + b2_ref[...])                            # (Cout, Hh*Wh)
    o_ref[0] = y.astype(o_ref.dtype)


# ----------------------------- wrapper -------------------------------------- #

@jax.jit
def down_forward(x_nchw, w1_hwio, b1, w2_hwio, b2):
    """Down: AvgPool2d(2) -> (Conv3x3 + GELU) x 2.  Input/output are NCHW."""
    n, cin, h, w = x_nchw.shape
    assert h % 2 == 0 and w % 2 == 0, "AvgPool2d(2) expects even spatial dims"
    hh, wh = h // 2, w // 2
    cmid = w1_hwio.shape[-1]
    cout = w2_hwio.shape[-1]

    # NCHW -> NHWC (tiny), then a free contiguous reshape exposing the 2x2 pool taps.
    x_nhwc = jnp.transpose(x_nchw, (0, 2, 3, 1))
    xr = x_nhwc.reshape(n, hh, 2, wh, 2 * cin)

    # im2col weight layouts; fold the 1/4 pool scale into conv1 weights.
    w1_mat = (w1_hwio * jnp.float32(0.25)).reshape(9 * cin, cmid)
    b1_row = b1.reshape(1, cmid)
    w2t_mat = jnp.transpose(w2_hwio.reshape(9 * cmid, cout))    # (Cout, 9*Cmid)
    b2_col = b2.reshape(cout, 1)

    out_flat = pl.pallas_call(
        _down_fused_kernel,
        out_shape=jax.ShapeDtypeStruct((n, cout, hh * wh), x_nchw.dtype),
        grid=(n,),
        in_specs=[
            pl.BlockSpec((1, hh, 2, wh, 2 * cin), lambda i: (i, 0, 0, 0, 0)),
            pl.BlockSpec((9 * cin, cmid), lambda i: (0, 0)),
            pl.BlockSpec((1, cmid), lambda i: (0, 0)),
            pl.BlockSpec((cout, 9 * cmid), lambda i: (0, 0)),
            pl.BlockSpec((cout, 1), lambda i: (0, 0)),
        ],
        out_specs=pl.BlockSpec((1, cout, hh * wh), lambda i: (i, 0, 0)),
        scratch_shapes=[
            pltpu.VMEM((hh + 2, wh + 2, cin), jnp.float32),     # padded pooled
            pltpu.VMEM((hh * wh, 9 * cin), jnp.float32),        # im2col conv1
            pltpu.VMEM((hh + 2, wh + 2, cmid), jnp.float32),    # padded conv1 act
            pltpu.VMEM((hh * wh, 9 * cmid), jnp.float32),       # im2col conv2
        ],
        compiler_params=pltpu.CompilerParams(
            dimension_semantics=("parallel",)),
    )(xr, w1_mat, b1_row, w2t_mat, b2_col)

    return out_flat.reshape(n, cout, hh, wh)                    # NCHW, no transpose


# ----------------------------- reference ------------------------------------ #

def down_reference(x_nchw, w1, b1, w2, b2):
    x = jnp.transpose(x_nchw, (0, 2, 3, 1))
    n, h, w, c = x.shape
    x = x.reshape(n, h // 2, 2, w // 2, 2, c).mean(axis=(2, 4))

    def conv(x, w_hwio, b):
        y = lax.conv_general_dilated(
            x, w_hwio, window_strides=(1, 1), padding="SAME",
            dimension_numbers=("NHWC", "HWIO", "NHWC"))
        y = y + b[None, None, None, :]
        return jax.nn.gelu(y, approximate=False)

    x = conv(x, w1, b1)
    x = conv(x, w2, b2)
    return jnp.transpose(x, (0, 3, 1, 2))


# ----------------------------- main ------------------------------------------ #

if __name__ == "__main__":
    key = jax.random.PRNGKey(0)
    k_x, k_w1, k_b1, k_w2, k_b2 = jax.random.split(key, 5)

    N, Cin, Cout, H, W = 2, 4, 8, 16, 16   # Down(in_channels=4, out_channels=8)

    x = jax.random.normal(k_x, (N, Cin, H, W), dtype=jnp.float32)
    # parameters in HWIO layout (same shapes as PyTorch Conv2d weights transposed
    # from (O, I, 3, 3)).
    w1 = 0.1 * jax.random.normal(k_w1, (3, 3, Cin, Cout), dtype=jnp.float32)
    b1 = 0.1 * jax.random.normal(k_b1, (Cout,), dtype=jnp.float32)
    w2 = 0.1 * jax.random.normal(k_w2, (3, 3, Cout, Cout), dtype=jnp.float32)
    b2 = 0.1 * jax.random.normal(k_b2, (Cout,), dtype=jnp.float32)

    out = jax.block_until_ready(down_forward(x, w1, b1, w2, b2))
    ref = jax.block_until_ready(down_reference(x, w1, b1, w2, b2))

    np.testing.assert_allclose(np.asarray(out), np.asarray(ref),
                               rtol=2e-3, atol=2e-3)
    assert out.shape == (N, Cout, H // 2, W // 2)
    print("KERNEL_OK")
</pallas_src>

<mosaic_0001>
module attributes {stable_mosaic.version = 11 : i64} {
  func.func @_down_fused_kernel(%arg0: i32, %arg1: memref<1x8x2x8x8xf32, #tpu.memory_space<vmem>>, %arg2: memref<36x8xf32, #tpu.memory_space<vmem>>, %arg3: memref<1x8xf32, #tpu.memory_space<vmem>>, %arg4: memref<8x72xf32, #tpu.memory_space<vmem>>, %arg5: memref<8x1xf32, #tpu.memory_space<vmem>>, %arg6: memref<1x8x64xf32, #tpu.memory_space<vmem>>, %arg7: memref<10x10x4xf32, #tpu.memory_space<vmem>>, %arg8: memref<64x36xf32, #tpu.memory_space<vmem>>, %arg9: memref<10x10x8xf32, #tpu.memory_space<vmem>>, %arg10: memref<64x72xf32, #tpu.memory_space<vmem>>) attributes {dimension_semantics = [#tpu.dimension_semantics<parallel>], iteration_bounds = array<i64: 2>, scalar_prefetch = 0 : i64, scratch_operands = 4 : i64, tpu.core_type = #tpu.core_type<tc>, window_params = [{transform_indices = @transform_0, window_bounds = array<i64: 1, 8, 2, 8, 8>}, {pipeline_mode = #tpu.pipeline_mode<synchronous>, transform_indices = @transform_1, window_bounds = array<i64: 36, 8>}, {pipeline_mode = #tpu.pipeline_mode<synchronous>, transform_indices = @transform_2, window_bounds = array<i64: 1, 8>}, {pipeline_mode = #tpu.pipeline_mode<synchronous>, transform_indices = @transform_3, window_bounds = array<i64: 8, 72>}, {pipeline_mode = #tpu.pipeline_mode<synchronous>, transform_indices = @transform_4, window_bounds = array<i64: 8, 1>}, {transform_indices = @transform_5, window_bounds = array<i64: 1, 8, 64>}]} {
    %c0 = arith.constant 0 : index
    %c0_0 = arith.constant 0 : index
    %c0_1 = arith.constant 0 : index
    %c0_2 = arith.constant 0 : index
    %c0_3 = arith.constant 0 : index
    %0 = vector.load %arg1[%c0, %c0_0, %c0_1, %c0_2, %c0_3] : memref<1x8x2x8x8xf32, #tpu.memory_space<vmem>>, vector<1x8x1x8x8xf32>
    %1 = vector.shape_cast %0 : vector<1x8x1x8x8xf32> to vector<8x8x8xf32>
    %c0_4 = arith.constant 0 : index
    %c0_5 = arith.constant 0 : index
    %c1 = arith.constant 1 : index
    %c0_6 = arith.constant 0 : index
    %c0_7 = arith.constant 0 : index
    %2 = vector.load %arg1[%c0_4, %c0_5, %c1, %c0_6, %c0_7] : memref<1x8x2x8x8xf32, #tpu.memory_space<vmem>>, vector<1x8x1x8x8xf32>
    %3 = vector.shape_cast %2 : vector<1x8x1x8x8xf32> to vector<8x8x8xf32>
    %4 = arith.addf %1, %3 : vector<8x8x8xf32>
    %5 = vector.extract_strided_slice %4 {offsets = [0, 0, 0], sizes = [8, 8, 4], strides = [1, 1, 1]} : vector<8x8x8xf32> to vector<8x8x4xf32>
    %6 = vector.extract_strided_slice %4 {offsets = [0, 0, 4], sizes = [8, 8, 4], strides = [1, 1, 1]} : vector<8x8x8xf32> to vector<8x8x4xf32>
    %7 = arith.addf %5, %6 : vector<8x8x4xf32>
    %cst = arith.constant 0.000000e+00 : f32
    %8 = vector.broadcast %cst : f32 to vector<10x10x4xf32>
    %c0_8 = arith.constant 0 : index
    %c0_9 = arith.constant 0 : index
    %c0_10 = arith.constant 0 : index
    %9 = vector.load %arg7[%c0_8, %c0_9, %c0_10] : memref<10x10x4xf32, #tpu.memory_space<vmem>>, vector<10x10x4xf32>
    tpu.vector_store %arg7[%c0_8, %c0_9, %c0_10], %8 {strides = array<i32>} : memref<10x10x4xf32, #tpu.memory_space<vmem>>, vector<10x10x4xf32>,
    %c1_11 = arith.constant 1 : index
    %c1_12 = arith.constant 1 : index
    %c0_13 = arith.constant 0 : index
    %10 = vector.load %arg7[%c1_11, %c1_12, %c0_13] : memref<10x10x4xf32, #tpu.memory_space<vmem>>, vector<8x8x4xf32>
    tpu.vector_store %arg7[%c1_11, %c1_12, %c0_13], %7 {strides = array<i32>} : memref<10x10x4xf32, #tpu.memory_space<vmem>>, vector<8x8x4xf32>,
    %c0_14 = arith.constant 0 : index
    %c0_15 = arith.constant 0 : index
    %c0_16 = arith.constant 0 : index
    %11 = vector.load %arg7[%c0_14, %c0_15, %c0_16] : memref<10x10x4xf32, #tpu.memory_space<vmem>>, vector<8x8x4xf32>
    %12 = vector.shape_cast %11 : vector<8x8x4xf32> to vector<64x4xf32>
    %c0_17 = arith.constant 0 : index
    %c0_18 = arith.constant 0 : index
    %13 = vector.load %arg8[%c0_17, %c0_18] : memref<64x36xf32, #tpu.memory_space<vmem>>, vector<64x4xf32>
    tpu.vector_store %arg8[%c0_17, %c0_18], %12 {strides = array<i32>} : memref<64x36xf32, #tpu.memory_space<vmem>>, vector<64x4xf32>,
    %c0_19 = arith.constant 0 : index
    %c1_20 = arith.constant 1 : index
    %c0_21 = arith.constant 0 : index
    %14 = vector.load %arg7[%c0_19, %c1_20, %c0_21] : memref<10x10x4xf32, #tpu.memory_space<vmem>>, vector<8x8x4xf32>
    %15 = vector.shape_cast %14 : vector<8x8x4xf32> to vector<64x4xf32>
    %c0_22 = arith.constant 0 : index
    %c4 = arith.constant 4 : index
    %16 = vector.load %arg8[%c0_22, %c4] : memref<64x36xf32, #tpu.memory_space<vmem>>, vector<64x4xf32>
    tpu.vector_store %arg8[%c0_22, %c4], %15 {strides = array<i32>} : memref<64x36xf32, #tpu.memory_space<vmem>>, vector<64x4xf32>,
    %c0_23 = arith.constant 0 : index
    %c2 = arith.constant 2 : index
    %c0_24 = arith.constant 0 : index
    %17 = vector.load %arg7[%c0_23, %c2, %c0_24] : memref<10x10x4xf32, #tpu.memory_space<vmem>>, vector<8x8x4xf32>
    %18 = vector.shape_cast %17 : vector<8x8x4xf32> to vector<64x4xf32>
    %c0_25 = arith.constant 0 : index
    %c8 = arith.constant 8 : index
    %19 = vector.load %arg8[%c0_25, %c8] : memref<64x36xf32, #tpu.memory_space<vmem>>, vector<64x4xf32>
    tpu.vector_store %arg8[%c0_25, %c8], %18 {strides = array<i32>} : memref<64x36xf32, #tpu.memory_space<vmem>>, vector<64x4xf32>,
    %c1_26 = arith.constant 1 : index
    %c0_27 = arith.constant 0 : index
    %c0_28 = arith.constant 0 : index
    %20 = vector.load %arg7[%c1_26, %c0_27, %c0_28] : memref<10x10x4xf32, #tpu.memory_space<vmem>>, vector<8x8x4xf32>
    %21 = vector.shape_cast %20 : vector<8x8x4xf32> to vector<64x4xf32>
    %c0_29 = arith.constant 0 : index
    %c12 = arith.constant 12 : index
    %22 = vector.load %arg8[%c0_29, %c12] : memref<64x36xf32, #tpu.memory_space<vmem>>, vector<64x4xf32>
    tpu.vector_store %arg8[%c0_29, %c12], %21 {strides = array<i32>} : memref<64x36xf32, #tpu.memory_space<vmem>>, vector<64x4xf32>,
    %c1_30 = arith.constant 1 : index
    %c1_31 = arith.constant 1 : index
    %c0_32 = arith.constant 0 : index
    %23 = vector.load %arg7[%c1_30, %c1_31, %c0_32] : memref<10x10x4xf32, #tpu.memory_space<vmem>>, vector<8x8x4xf32>
    %24 = vector.shape_cast %23 : vector<8x8x4xf32> to vector<64x4xf32>
    %c0_33 = arith.constant 0 : index
    %c16 = arith.constant 16 : index
    %25 = vector.load %arg8[%c0_33, %c16] : memref<64x36xf32, #tpu.memory_space<vmem>>, vector<64x4xf32>
    tpu.vector_store %arg8[%c0_33, %c16], %24 {strides = array<i32>} : memref<64x36xf32, #tpu.memory_space<vmem>>, vector<64x4xf32>,
    %c1_34 = arith.constant 1 : index
    %c2_35 = arith.constant 2 : index
    %c0_36 = arith.constant 0 : index
    %26 = vector.load %arg7[%c1_34, %c2_35, %c0_36] : memref<10x10x4xf32, #tpu.memory_space<vmem>>, vector<8x8x4xf32>
    %27 = vector.shape_cast %26 : vector<8x8x4xf32> to vector<64x4xf32>
    %c0_37 = arith.constant 0 : index
    %c20 = arith.constant 20 : index
    %28 = vector.load %arg8[%c0_37, %c20] : memref<64x36xf32, #tpu.memory_space<vmem>>, vector<64x4xf32>
    tpu.vector_store %arg8[%c0_37, %c20], %27 {strides = array<i32>} : memref<64x36xf32, #tpu.memory_space<vmem>>, vector<64x4xf32>,
    %c2_38 = arith.constant 2 : index
    %c0_39 = arith.constant 0 : index
    %c0_40 = arith.constant 0 : index
    %29 = vector.load %arg7[%c2_38, %c0_39, %c0_40] : memref<10x10x4xf32, #tpu.memory_space<vmem>>, vector<8x8x4xf32>
    %30 = vector.shape_cast %29 : vector<8x8x4xf32> to vector<64x4xf32>
    %c0_41 = arith.constant 0 : index
    %c24 = arith.constant 24 : index
    %31 = vector.load %arg8[%c0_41, %c24] : memref<64x36xf32, #tpu.memory_space<vmem>>, vector<64x4xf32>
    tpu.vector_store %arg8[%c0_41, %c24], %30 {strides = array<i32>} : memref<64x36xf32, #tpu.memory_space<vmem>>, vector<64x4xf32>,
    %c2_42 = arith.constant 2 : index
    %c1_43 = arith.constant 1 : index
    %c0_44 = arith.constant 0 : index
    %32 = vector.load %arg7[%c2_42, %c1_43, %c0_44] : memref<10x10x4xf32, #tpu.memory_space<vmem>>, vector<8x8x4xf32>
    %33 = vector.shape_cast %32 : vector<8x8x4xf32> to vector<64x4xf32>
    %c0_45 = arith.constant 0 : index
    %c28 = arith.constant 28 : index
    %34 = vector.load %arg8[%c0_45, %c28] : memref<64x36xf32, #tpu.memory_space<vmem>>, vector<64x4xf32>
    tpu.vector_store %arg8[%c0_45, %c28], %33 {strides = array<i32>} : memref<64x36xf32, #tpu.memory_space<vmem>>, vector<64x4xf32>,
    %c2_46 = arith.constant 2 : index
    %c2_47 = arith.constant 2 : index
    %c0_48 = arith.constant 0 : index
    %35 = vector.load %arg7[%c2_46, %c2_47, %c0_48] : memref<10x10x4xf32, #tpu.memory_space<vmem>>, vector<8x8x4xf32>
    %36 = vector.shape_cast %35 : vector<8x8x4xf32> to vector<64x4xf32>
    %c0_49 = arith.constant 0 : index
    %c32 = arith.constant 32 : index
    %37 = vector.load %arg8[%c0_49, %c32] : memref<64x36xf32, #tpu.memory_space<vmem>>, vector<64x4xf32>
    tpu.vector_store %arg8[%c0_49, %c32], %36 {strides = array<i32>} : memref<64x36xf32, #tpu.memory_space<vmem>>, vector<64x4xf32>,
    %c0_50 = arith.constant 0 : index
    %c0_51 = arith.constant 0 : index
    %38 = vector.load %arg8[%c0_50, %c0_51] : memref<64x36xf32, #tpu.memory_space<vmem>>, vector<64x36xf32>
    %c0_52 = arith.constant 0 : index
    %c0_53 = arith.constant 0 : index
    %39 = vector.load %arg2[%c0_52, %c0_53] : memref<36x8xf32, #tpu.memory_space<vmem>>, vector<36x8xf32>
    %cst_54 = arith.constant dense<0.000000e+00> : vector<64x8xf32>
    %40 = tpu.matmul %38, %39, %cst_54 {dimension_numbers = #tpu.dot_dimension_numbers<[1], [0], [0], [1], [0, 0, 1, 1], [], []>} : vector<64x36xf32>, vector<36x8xf32>, vector<64x8xf32> -> vector<64x8xf32>
    %c0_55 = arith.constant 0 : index
    %c0_56 = arith.constant 0 : index
    %41 = vector.load %arg3[%c0_55, %c0_56] : memref<1x8xf32, #tpu.memory_space<vmem>>, vector<1x8xf32>
    %42 = vector.broadcast %41 : vector<1x8xf32> to vector<64x8xf32>
    %43 = arith.addf %40, %42 : vector<64x8xf32>
    %cst_57 = arith.constant 5.000000e-01 : f32
    %44 = vector.broadcast %cst_57 : f32 to vector<64x8xf32>
    %45 = arith.mulf %44, %43 : vector<64x8xf32>
    %cst_58 = arith.constant 0.707106769 : f32
    %46 = vector.broadcast %cst_58 : f32 to vector<64x8xf32>
    %47 = arith.mulf %43, %46 : vector<64x8xf32>
    %48 = math.erf %47 : vector<64x8xf32>
    %cst_59 = arith.constant 1.000000e+00 : f32
    %49 = vector.broadcast %cst_59 : f32 to vector<64x8xf32>
    %50 = arith.addf %49, %48 : vector<64x8xf32>
    %51 = arith.mulf %45, %50 : vector<64x8xf32>
    %cst_60 = arith.constant 0.000000e+00 : f32
    %52 = vector.broadcast %cst_60 : f32 to vector<10x10x8xf32>
    %c0_61 = arith.constant 0 : index
    %c0_62 = arith.constant 0 : index
    %c0_63 = arith.constant 0 : index
    %53 = vector.load %arg9[%c0_61, %c0_62, %c0_63] : memref<10x10x8xf32, #tpu.memory_space<vmem>>, vector<10x10x8xf32>
    tpu.vector_store %arg9[%c0_61, %c0_62, %c0_63], %52 {strides = array<i32>} : memref<10x10x8xf32, #tpu.memory_space<vmem>>, vector<10x10x8xf32>,
    %54 = vector.shape_cast %51 : vector<64x8xf32> to vector<8x8x8xf32>
    %c1_64 = arith.constant 1 : index
    %c1_65 = arith.constant 1 : index
    %c0_66 = arith.constant 0 : index
    %55 = vector.load %arg9[%c1_64, %c1_65, %c0_66] : memref<10x10x8xf32, #tpu.memory_space<vmem>>, vector<8x8x8xf32>
    tpu.vector_store %arg9[%c1_64, %c1_65, %c0_66], %54 {strides = array<i32>} : memref<10x10x8xf32, #tpu.memory_space<vmem>>, vector<8x8x8xf32>,
    %c0_67 = arith.constant 0 : index
    %c0_68 = arith.constant 0 : index
    %c0_69 = arith.constant 0 : index
    %56 = vector.load %arg9[%c0_67, %c0_68, %c0_69] : memref<10x10x8xf32, #tpu.memory_space<vmem>>, vector<8x8x8xf32>
    %57 = vector.shape_cast %56 : vector<8x8x8xf32> to vector<64x8xf32>
    %c0_70 = arith.constant 0 : index
    %c0_71 = arith.constant 0 : index
    %58 = vector.load %arg10[%c0_70, %c0_71] : memref<64x72xf32, #tpu.memory_space<vmem>>, vector<64x8xf32>
    tpu.vector_store %arg10[%c0_70, %c0_71], %57 {strides = array<i32>} : memref<64x72xf32, #tpu.memory_space<vmem>>, vector<64x8xf32>,
    %c0_72 = arith.constant 0 : index
    %c1_73 = arith.constant 1 : index
    %c0_74 = arith.constant 0 : index
    %59 = vector.load %arg9[%c0_72, %c1_73, %c0_74] : memref<10x10x8xf32, #tpu.memory_space<vmem>>, vector<8x8x8xf32>
    %60 = vector.shape_cast %59 : vector<8x8x8xf32> to vector<64x8xf32>
    %c0_75 = arith.constant 0 : index
    %c8_76 = arith.constant 8 : index
    %61 = vector.load %arg10[%c0_75, %c8_76] : memref<64x72xf32, #tpu.memory_space<vmem>>, vector<64x8xf32>
    tpu.vector_store %arg10[%c0_75, %c8_76], %60 {strides = array<i32>} : memref<64x72xf32, #tpu.memory_space<vmem>>, vector<64x8xf32>,
    %c0_77 = arith.constant 0 : index
    %c2_78 = arith.constant 2 : index
    %c0_79 = arith.constant 0 : index
    %62 = vector.load %arg9[%c0_77, %c2_78, %c0_79] : memref<10x10x8xf32, #tpu.memory_space<vmem>>, vector<8x8x8xf32>
    %63 = vector.shape_cast %62 : vector<8x8x8xf32> to vector<64x8xf32>
    %c0_80 = arith.constant 0 : index
    %c16_81 = arith.constant 16 : index
    %64 = vector.load %arg10[%c0_80, %c16_81] : memref<64x72xf32, #tpu.memory_space<vmem>>, vector<64x8xf32>
    tpu.vector_store %arg10[%c0_80, %c16_81], %63 {strides = array<i32>} : memref<64x72xf32, #tpu.memory_space<vmem>>, vector<64x8xf32>,
    %c1_82 = arith.constant 1 : index
    %c0_83 = arith.constant 0 : index
    %c0_84 = arith.constant 0 : index
    %65 = vector.load %arg9[%c1_82, %c0_83, %c0_84] : memref<10x10x8xf32, #tpu.memory_space<vmem>>, vector<8x8x8xf32>
    %66 = vector.shape_cast %65 : vector<8x8x8xf32> to vector<64x8xf32>
    %c0_85 = arith.constant 0 : index
    %c24_86 = arith.constant 24 : index
    %67 = vector.load %arg10[%c0_85, %c24_86] : memref<64x72xf32, #tpu.memory_space<vmem>>, vector<64x8xf32>
    tpu.vector_store %arg10[%c0_85, %c24_86], %66 {strides = array<i32>} : memref<64x72xf32, #tpu.memory_space<vmem>>, vector<64x8xf32>,
    %c1_87 = arith.constant 1 : index
    %c1_88 = arith.constant 1 : index
    %c0_89 = arith.constant 0 : index
    %68 = vector.load %arg9[%c1_87, %c1_88, %c0_89] : memref<10x10x8xf32, #tpu.memory_space<vmem>>, vector<8x8x8xf32>
    %69 = vector.shape_cast %68 : vector<8x8x8xf32> to vector<64x8xf32>
    %c0_90 = arith.constant 0 : index
    %c32_91 = arith.constant 32 : index
    %70 = vector.load %arg10[%c0_90, %c32_91] : memref<64x72xf32, #tpu.memory_space<vmem>>, vector<64x8xf32>
    tpu.vector_store %arg10[%c0_90, %c32_91], %69 {strides = array<i32>} : memref<64x72xf32, #tpu.memory_space<vmem>>, vector<64x8xf32>,
    %c1_92 = arith.constant 1 : index
    %c2_93 = arith.constant 2 : index
    %c0_94 = arith.constant 0 : index
    %71 = vector.load %arg9[%c1_92, %c2_93, %c0_94] : memref<10x10x8xf32, #tpu.memory_space<vmem>>, vector<8x8x8xf32>
    %72 = vector.shape_cast %71 : vector<8x8x8xf32> to vector<64x8xf32>
    %c0_95 = arith.constant 0 : index
    %c40 = arith.constant 40 : index
    %73 = vector.load %arg10[%c0_95, %c40] : memref<64x72xf32, #tpu.memory_space<vmem>>, vector<64x8xf32>
    tpu.vector_store %arg10[%c0_95, %c40], %72 {strides = array<i32>} : memref<64x72xf32, #tpu.memory_space<vmem>>, vector<64x8xf32>,
    %c2_96 = arith.constant 2 : index
    %c0_97 = arith.constant 0 : index
    %c0_98 = arith.constant 0 : index
    %74 = vector.load %arg9[%c2_96, %c0_97, %c0_98] : memref<10x10x8xf32, #tpu.memory_space<vmem>>, vector<8x8x8xf32>
    %75 = vector.shape_cast %74 : vector<8x8x8xf32> to vector<64x8xf32>
    %c0_99 = arith.constant 0 : index
    %c48 = arith.constant 48 : index
    %76 = vector.load %arg10[%c0_99, %c48] : memref<64x72xf32, #tpu.memory_space<vmem>>, vector<64x8xf32>
    tpu.vector_store %arg10[%c0_99, %c48], %75 {strides = array<i32>} : memref<64x72xf32, #tpu.memory_space<vmem>>, vector<64x8xf32>,
    %c2_100 = arith.constant 2 : index
    %c1_101 = arith.constant 1 : index
    %c0_102 = arith.constant 0 : index
    %77 = vector.load %arg9[%c2_100, %c1_101, %c0_102] : memref<10x10x8xf32, #tpu.memory_space<vmem>>, vector<8x8x8xf32>
    %78 = vector.shape_cast %77 : vector<8x8x8xf32> to vector<64x8xf32>
    %c0_103 = arith.constant 0 : index
    %c56 = arith.constant 56 : index
    %79 = vector.load %arg10[%c0_103, %c56] : memref<64x72xf32, #tpu.memory_space<vmem>>, vector<64x8xf32>
    tpu.vector_store %arg10[%c0_103, %c56], %78 {strides = array<i32>} : memref<64x72xf32, #tpu.memory_space<vmem>>, vector<64x8xf32>,
    %c2_104 = arith.constant 2 : index
    %c2_105 = arith.constant 2 : index
    %c0_106 = arith.constant 0 : index
    %80 = vector.load %arg9[%c2_104, %c2_105, %c0_106] : memref<10x10x8xf32, #tpu.memory_space<vmem>>, vector<8x8x8xf32>
    %81 = vector.shape_cast %80 : vector<8x8x8xf32> to vector<64x8xf32>
    %c0_107 = arith.constant 0 : index
    %c64 = arith.constant 64 : index
    %82 = vector.load %arg10[%c0_107, %c64] : memref<64x72xf32, #tpu.memory_space<vmem>>, vector<64x8xf32>
    tpu.vector_store %arg10[%c0_107, %c64], %81 {strides = array<i32>} : memref<64x72xf32, #tpu.memory_space<vmem>>, vector<64x8xf32>,
    %c0_108 = arith.constant 0 : index
    %c0_109 = arith.constant 0 : index
    %83 = vector.load %arg4[%c0_108, %c0_109] : memref<8x72xf32, #tpu.memory_space<vmem>>, vector<8x72xf32>
    %c0_110 = arith.constant 0 : index
    %c0_111 = arith.constant 0 : index
    %84 = vector.load %arg10[%c0_110, %c0_111] : memref<64x72xf32, #tpu.memory_space<vmem>>, vector<64x72xf32>
    %cst_112 = arith.constant dense<0.000000e+00> : vector<8x64xf32>
    %85 = tpu.matmul %83, %84, %cst_112 {dimension_numbers = #tpu.dot_dimension_numbers<[1], [1], [0], [0], [0, 0, 1, 0], [], []>} : vector<8x72xf32>, vector<64x72xf32>, vector<8x64xf32> -> vector<8x64xf32>
    %c0_113 = arith.constant 0 : index
    %c0_114 = arith.constant 0 : index
    %86 = vector.load %arg5[%c0_113, %c0_114] : memref<8x1xf32, #tpu.memory_space<vmem>>, vector<8x1xf32>
    %87 = vector.broadcast %86 : vector<8x1xf32> to vector<8x64xf32>
    %88 = arith.addf %85, %87 : vector<8x64xf32>
    %cst_115 = arith.constant 5.000000e-01 : f32
    %89 = vector.broadcast %cst_115 : f32 to vector<8x64xf32>
    %90 = arith.mulf %89, %88 : vector<8x64xf32>
    %cst_116 = arith.constant 0.707106769 : f32
    %91 = vector.broadcast %cst_116 : f32 to vector<8x64xf32>
    %92 = arith.mulf %88, %91 : vector<8x64xf32>
    %93 = math.erf %92 : vector<8x64xf32>
    %cst_117 = arith.constant 1.000000e+00 : f32
    %94 = vector.broadcast %cst_117 : f32 to vector<8x64xf32>
    %95 = arith.addf %94, %93 : vector<8x64xf32>
    %96 = arith.mulf %90, %95 : vector<8x64xf32>
    %c0_118 = arith.constant 0 : index
    %c0_119 = arith.constant 0 : index
    %c0_120 = arith.constant 0 : index
    %97 = vector.load %arg6[%c0_118, %c0_119, %c0_120] : memref<1x8x64xf32, #tpu.memory_space<vmem>>, vector<1x8x64xf32>
    %98 = vector.shape_cast %97 : vector<1x8x64xf32> to vector<8x64xf32>
    %99 = vector.shape_cast %96 : vector<8x64xf32> to vector<1x8x64xf32>
    tpu.vector_store %arg6[%c0_118, %c0_119, %c0_120], %99 {strides = array<i32>} : memref<1x8x64xf32, #tpu.memory_space<vmem>>, vector<1x8x64xf32>,
    return
  }
  func.func @transform_0(%arg0: i32) -> (i32, i32, i32, i32, i32) {
    %c0_i32 = arith.constant 0 : i32
    %c0_i32_0 = arith.constant 0 : i32
    %c0_i32_1 = arith.constant 0 : i32
    %c0_i32_2 = arith.constant 0 : i32
    %c0_i32_3 = arith.constant 0 : i32
    return %arg0, %c0_i32, %c0_i32_0, %c0_i32_1, %c0_i32_2 : i32, i32, i32, i32, i32
  }
  func.func @transform_1(%arg0: i32) -> (i32, i32) {
    %c0_i32 = arith.constant 0 : i32
    %c0_i32_0 = arith.constant 0 : i32
    %c0_i32_1 = arith.constant 0 : i32
    return %c0_i32, %c0_i32_0 : i32, i32
  }
  func.func @transform_2(%arg0: i32) -> (i32, i32) {
    %c0_i32 = arith.constant 0 : i32
    %c0_i32_0 = arith.constant 0 : i32
    %c0_i32_1 = arith.constant 0 : i32
    return %c0_i32, %c0_i32_0 : i32, i32
  }
  func.func @transform_3(%arg0: i32) -> (i32, i32) {
    %c0_i32 = arith.constant 0 : i32
    %c0_i32_0 = arith.constant 0 : i32
    %c0_i32_1 = arith.constant 0 : i32
    return %c0_i32, %c0_i32_0 : i32, i32
  }
  func.func @transform_4(%arg0: i32) -> (i32, i32) {
    %c0_i32 = arith.constant 0 : i32
    %c0_i32_0 = arith.constant 0 : i32
    %c0_i32_1 = arith.constant 0 : i32
    return %c0_i32, %c0_i32_0 : i32, i32
  }
  func.func @transform_5(%arg0: i32) -> (i32, i32, i32) {
    %c0_i32 = arith.constant 0 : i32
    %c0_i32_0 = arith.constant 0 : i32
    %c0_i32_1 = arith.constant 0 : i32
    return %arg0, %c0_i32, %c0_i32_0 : i32, i32, i32
  }
}

</mosaic_0001>

<llo_original>
// kernel: down_forward.1
$region0: #{down_forward.1}
  #allocation0 [shape = 'u32[]', space=smem, size = 0x4, offset = 0x4, fixed_abs, tag = 'smem constant byte address 0x4 - core index']
  #allocation1 [shape = 'u32[144,128]{1,0:T(1,128)}', space=vmem, size = 0x12000, scoped, tag = 'internal scratch']
  #allocation2 [shape = 'f32[10,10,4]{2,1,0:T(8,128)}', space=vmem, size = 0x14000, scoped, tag = 'scratch operand']
  #allocation3 [shape = 'f32[64,36]{1,0:T(8,128)}', space=vmem, size = 0x8000, scoped, tag = 'scratch operand']
  #allocation4 [shape = 'f32[10,10,8]{2,1,0:T(8,128)}', space=vmem, size = 0x14000, scoped, tag = 'scratch operand']
  #allocation5 [shape = 'f32[64,72]{1,0:T(8,128)}', space=vmem, size = 0x8000, scoped, tag = 'scratch operand']
  %s0 = inlined_call_operand.vmem [shape: f32[2,8,2,8,8], index: 0, kind: input, shape index: {}]
  %s1 = inlined_call_operand.vmem [shape: f32[36,8], index: 1, kind: input, shape index: {}]
  %s2 = inlined_call_operand.vmem [shape: f32[1,8], index: 2, kind: input, shape index: {}]
  %s3 = inlined_call_operand.vmem [shape: f32[8,72], index: 3, kind: input, shape index: {}]
  %s4 = inlined_call_operand.vmem [shape: f32[8,1], index: 4, kind: input, shape index: {}]
  %s5 = inlined_call_operand.vmem [shape: f32[2,8,64], index: 5, kind: output, shape index: {}]
  %s6 = sld [smem:[#allocation0]]
  $region53: #{down_forward.1} parent=0
    _
  %s8 = ssub.s32 1, %s6
  %s9 = scalar_select 0, %s8, %s6
  loop: start=0, step=1, limit=4
  $region2: #{down_forward.1} parent=0 // loop_pre_header
    _
  $region3: #{down_forward.1} parent=0 // loop_header
    %s11 = sphi 0, %s15
    %p12 = scmp.ge.s32.totalorder %s11, 4
    %s21 = sphi 0, %s23
    %s24 = sphi 0, %s21
    %s25 = sphi 0, %s24
    %s41 = sphi 0, %s25
    %s45 = sphi 0, %s45
    %s47 = sphi 0, %s45
    %s48 = sphi 0, %s47
    %s62 = sphi 0, %s48
    %s66 = sphi 0, %s66
    %s68 = sphi 0, %s66
    %s69 = sphi 0, %s68
    %s83 = sphi 0, %s69
    %s87 = sphi 0, %s87
    %s89 = sphi 0, %s87
    %s90 = sphi 0, %s89
    %s104 = sphi 0, %s90
    %s108 = sphi 0, %s108
    %s110 = sphi 0, %s108
    %s111 = sphi 0, %s110
    %s125 = sphi 0, %s111
    %s131 = sphi 0, %s133
    %s134 = sphi 0, %s131
    %s135 = sphi 0, %s134
    %s151 = sphi 0, %s135
  $region4: #{down_forward.1} parent=0 // loop_header_branch
    %14 = sbr.rel (%p12) target = $region8
  $region5: #{down_forward.1} parent=0 // loop_body
    %s16 = ssub.s32 %s11, 1
    %s17 = ssub.s32 %s11, 2
    %s18 = sadd.s32 %s11, 1
    %s19 = ssub.s32 %s11, %s18
    %p20 = scmp.eq.s32.totalorder %s19, 0
    %s22 = sadd.s32 %s21, 1
    %s23 = scalar_select %p20, %s21, %s22
    %p26 = pneg %p20
    %p27 = scmp.eq.s32.totalorder %s11, 1
    %p28 = por %p26, %p27
    %p29 = scmp.ne.s32.totalorder %s21, %s24
    %p30 = scmp.eq.s32.totalorder %s11, 0
    %p31 = por %p29, %p30
    %p32 = scmp.ne.s32.totalorder %s21, %s24
    %p33 = scmp.eq.s32.totalorder %s16, 1
    %p34 = por %p32, %p33
    %p35 = scmp.ne.s32.totalorder %s24, %s25
    %p36 = scmp.eq.s32.totalorder %s16, 0
    %p37 = por %p35, %p36
    %p38 = scmp.ne.s32.totalorder %s24, %s25
    %p39 = scmp.eq.s32.totalorder %s17, 1
    %p40 = por %p38, %p39
    %p42 = scmp.ne.s32.totalorder %s25, %s41
    %p43 = scmp.eq.s32.totalorder %s17, 0
    %p44 = por %p42, %p43
    %s46 = sadd.s32 %s45, 1
    %p49 = scmp.eq.s32.totalorder %s11, 1
    %p50 = scmp.ne.s32.totalorder %s45, %s47
    %p51 = scmp.eq.s32.totalorder %s11, 0
    %p52 = por %p50, %p51
    %p53 = scmp.ne.s32.totalorder %s45, %s47
    %p54 = scmp.eq.s32.totalorder %s16, 1
    %p55 = por %p53, %p54
    %p56 = scmp.ne.s32.totalorder %s47, %s48
    %p57 = scmp.eq.s32.totalorder %s16, 0
    %p58 = por %p56, %p57
    %p59 = scmp.ne.s32.totalorder %s47, %s48
    %p60 = scmp.eq.s32.totalorder %s17, 1
    %p61 = por %p59, %p60
    %p63 = scmp.ne.s32.totalorder %s48, %s62
    %p64 = scmp.eq.s32.totalorder %s17, 0
    %p65 = por %p63, %p64
    %s67 = sadd.s32 %s66, 1
    %p70 = scmp.eq.s32.totalorder %s11, 1
    %p71 = scmp.ne.s32.totalorder %s66, %s68
    %p72 = scmp.eq.s32.totalorder %s11, 0
    %p73 = por %p71, %p72
    %p74 = scmp.ne.s32.totalorder %s66, %s68
    %p75 = scmp.eq.s32.totalorder %s16, 1
    %p76 = por %p74, %p75
    %p77 = scmp.ne.s32.totalorder %s68, %s69
    %p78 = scmp.eq.s32.totalorder %s16, 0
    %p79 = por %p77, %p78
    %p80 = scmp.ne.s32.totalorder %s68, %s69
    %p81 = scmp.eq.s32.totalorder %s17, 1
    %p82 = por %p80, %p81
    %p84 = scmp.ne.s32.totalorder %s69, %s83
    %p85 = scmp.eq.s32.totalorder %s17, 0
    %p86 = por %p84, %p85
    %s88 = sadd.s32 %s87, 1
    %p91 = scmp.eq.s32.totalorder %s11, 1
    %p92 = scmp.ne.s32.totalorder %s87, %s89
    %p93 = scmp.eq.s32.totalorder %s11, 0
    %p94 = por %p92, %p93
    %p95 = scmp.ne.s32.totalorder %s87, %s89
    %p96 = scmp.eq.s32.totalorder %s16, 1
    %p97 = por %p95, %p96
    %p98 = scmp.ne.s32.totalorder %s89, %s90
    %p99 = scmp.eq.s32.totalorder %s16, 0
    %p100 = por %p98, %p99
    %p101 = scmp.ne.s32.totalorder %s89, %s90
    %p102 = scmp.eq.s32.totalorder %s17, 1
    %p103 = por %p101, %p102
    %p105 = scmp.ne.s32.totalorder %s90, %s104
    %p106 = scmp.eq.s32.totalorder %s17, 0
    %p107 = por %p105, %p106
    %s109 = sadd.s32 %s108, 1
    %p112 = scmp.eq.s32.totalorder %s11, 1
    %p113 = scmp.ne.s32.totalorder %s108, %s110
    %p114 = scmp.eq.s32.totalorder %s11, 0
    %p115 = por %p113, %p114
    %p116 = scmp.ne.s32.totalorder %s108, %s110
    %p117 = scmp.eq.s32.totalorder %s16, 1
    %p118 = por %p116, %p117
    %p119 = scmp.ne.s32.totalorder %s110, %s111
    %p120 = scmp.eq.s32.totalorder %s16, 0
    %p121 = por %p119, %p120
    %p122 = scmp.ne.s32.totalorder %s110, %s111
    %p123 = scmp.eq.s32.totalorder %s17, 1
    %p124 = por %p122, %p123
    %p126 = scmp.ne.s32.totalorder %s111, %s125
    %p127 = scmp.eq.s32.totalorder %s17, 0
    %p128 = por %p126, %p127
    %s129 = ssub.s32 %s11, %s18
    %p130 = scmp.eq.s32.totalorder %s129, 0
    %s132 = sadd.s32 %s131, 1
    %s133 = scalar_select %p130, %s131, %s132
    %p136 = pneg %p130
    %p137 = scmp.eq.s32.totalorder %s11, 1
    %p138 = por %p136, %p137
    %p139 = scmp.ne.s32.totalorder %s131, %s134
    %p140 = scmp.eq.s32.totalorder %s11, 0
    %p141 = por %p139, %p140
    %p142 = scmp.ne.s32.totalorder %s131, %s134
    %p143 = scmp.eq.s32.totalorder %s16, 1
    %p144 = por %p142, %p143
    %p145 = scmp.ne.s32.totalorder %s134, %s135
    %p146 = scmp.eq.s32.totalorder %s16, 0
    %p147 = por %p145, %p146
    %p148 = scmp.ne.s32.totalorder %s134, %s135
    %p149 = scmp.eq.s32.totalorder %s17, 1
    %p150 = por %p148, %p149
    %p152 = scmp.ne.s32.totalorder %s135, %s151
    %p153 = scmp.eq.s32.totalorder %s17, 0
    %p154 = por %p152, %p153
    %p155 = scmp.le.s32.totalorder 1, %s11
    %p156 = scmp.lt.s32.totalorder %s11, 3
    %p157 = pnand %p155, %p156
    %p158 = pneg %p157
    // Predicated region
    $region9: #{down_forward.1} parent=5 // pred_check
      _
    $region10: #{down_forward.1} parent=5 // pred_check_branch
      %160 = sbr.rel (%p157) target = $region12
    $region11: #{down_forward.1} parent=5 // pred_region
      %s161 = ssub.s32 %s11, 1
      // Predicated region
      $region13: #{down_forward.1} parent=11 // pred_check
        %p162 = pneg %p58
      $region14: #{down_forward.1} parent=11 // pred_check_branch
        %164 = sbr.rel (%p162) target = $region16
      $region15: #{down_forward.1} parent=11 // pred_region
        _
      $region16: #{down_forward.1} parent=11 // pred_fallthru
        _
      // Predicated region
      $region17: #{down_forward.1} parent=11 // pred_check
        %p165 = pneg %p79
      $region18: #{down_forward.1} parent=11 // pred_check_branch
        %167 = sbr.rel (%p165) target = $region20
      $region19: #{down_forward.1} parent=11 // pred_region
        _
      $region20: #{down_forward.1} parent=11 // pred_fallthru
        _
      // Predicated region
      $region21: #{down_forward.1} parent=11 // pred_check
        %p168 = pneg %p100
      $region22: #{down_forward.1} parent=11 // pred_check_branch
        %170 = sbr.rel (%p168) target = $region24
      $region23: #{down_forward.1} parent=11 // pred_region
        _
      $region24: #{down_forward.1} parent=11 // pred_fallthru
        _
      // Predicated region
      $region25: #{down_forward.1} parent=11 // pred_check
        %p171 = pneg %p121
      $region26: #{down_forward.1} parent=11 // pred_check_branch
        %173 = sbr.rel (%p171) target = $region28
      $region27: #{down_forward.1} parent=11 // pred_region
        _
      $region28: #{down_forward.1} parent=11 // pred_fallthru
        _
    $region12: #{down_forward.1} parent=5 // pred_fallthru
      _
    %p174 = scmp.lt.s32.totalorder %s11, 2
    // Predicated region
    $region29: #{down_forward.1} parent=5 // pred_check
      %p175 = pneg %p174
    $region30: #{down_forward.1} parent=5 // pred_check_branch
      %177 = sbr.rel (%p175) target = $region32
    $region31: #{down_forward.1} parent=5 // pred_region
      // Predicated region
      $region33: #{down_forward.1} parent=31 // pred_check
        %p178 = pneg %p31
      $region34: #{down_forward.1} parent=31 // pred_check_branch
        %180 = sbr.rel (%p178) target = $region36
      $region35: #{down_forward.1} parent=31 // pred_region
        %p181 = scmp.lt.s32.totalorder %s11, 1
        %s182 = scalar_select %p181, %s11, 1
        %s183 = smul.addr %s182, 16
        %s184 = smul.addr %s183, 8
        %s185 = scalar_lea.vmem %s0, %s184
      $region36: #{down_forward.1} parent=31 // pred_fallthru
        _
    $region32: #{down_forward.1} parent=5 // pred_fallthru
      _
    %p186 = scmp.le.s32.totalorder 1, %s11
    %p187 = scmp.lt.s32.totalorder %s11, 3
    %p188 = pnand %p186, %p187
    %p189 = pneg %p188
    // Predicated region
    $region37: #{down_forward.1} parent=5 // pred_check
      _
    $region38: #{down_forward.1} parent=5 // pred_check_branch
      %191 = sbr.rel (%p188) target = $region40
    $region39: #{down_forward.1} parent=5 // pred_region
      %s192 = ssub.s32 %s11, 1
      %p193 = scmp.lt.s32.totalorder %s16, 1
      %s194 = scalar_select %p193, %s16, 1
      %s195 = smul.addr %s194, 16
      %s196 = smul.addr %s195, 8
      %s197 = scalar_lea.vmem %s0, %s196
      %p198 = pneg %p37
      %p199 = pneg %p34
      %p200 = pneg %p58
      %p201 = pneg %p55
      %p202 = pneg %p79
      %p203 = pneg %p76
      %p204 = pneg %p100
      %p205 = pneg %p97
      %p206 = pneg %p121
      %p207 = pneg %p118
      %p208 = pneg %p147
      %p209 = pneg %p144
      %p210 = scmp.lt.s32.totalorder %s16, 1
      %s211 = scalar_select %p210, %s16, 1
      %s212 = smul.addr %s211, 8
      %s213 = scalar_lea.vmem %s5, %s212
      %p214 = scmp.lt.s32.totalorder %s16, 1
      %s215 = scalar_select %p214, %s16, 1
      %s216 = smul.addr %s215, 16
      %s217 = smul.addr %s216, 8
      %s218 = scalar_lea.vmem %s0, %s217
      %p219 = scmp.lt.s32.totalorder %s16, 1
      %s220 = scalar_select %p219, %s16, 1
      %s221 = smul.addr %s220, 8
      %s222 = scalar_lea.vmem %s5, %s221
      %v223 = vld [vmem:[%s218] sm:$0xff]
      %v224 = vld [vmem:[%s218 + $0x10] sm:$0xff]
      %v225 = vld [vmem:[%s218 + $0x20] sm:$0xff]
      %v226 = vld [vmem:[%s218 + $0x30] sm:$0xff]
      %v227 = vld [vmem:[%s218 + $0x40] sm:$0xff]
      %v228 = vld [vmem:[%s218 + $0x50] sm:$0xff]
      %v229 = vld [vmem:[%s218 + $0x60] sm:$0xff]
      %v230 = vld [vmem:[%s218 + $0x70] sm:$0xff]
      %s231 = scalar_lea.vmem %s218, 8
      %v232 = vld [vmem:[%s231] sm:$0xff]
      %v233 = vld [vmem:[%s231 + $0x10] sm:$0xff]
      %v234 = vld [vmem:[%s231 + $0x20] sm:$0xff]
      %v235 = vld [vmem:[%s231 + $0x30] sm:$0xff]
      %v236 = vld [vmem:[%s231 + $0x40] sm:$0xff]
      %v237 = vld [vmem:[%s231 + $0x50] sm:$0xff]
      %v238 = vld [vmem:[%s231 + $0x60] sm:$0xff]
      %v239 = vld [vmem:[%s231 + $0x70] sm:$0xff]
      %v240 = vadd.f32 %v223, %v232
      %v241 = vadd.f32 %v224, %v233
      %v242 = vadd.f32 %v225, %v234
      %v243 = vadd.f32 %v226, %v235
      %v244 = vadd.f32 %v227, %v236
      %v245 = vadd.f32 %v228, %v237
      %v246 = vadd.f32 %v229, %v238
      %v247 = vadd.f32 %v230, %v239
      %256 = vrot.lane.b32.xlu0 %v240, 124
      %v257 = vpop.permute.xlu0 %256
      %258 = vrot.lane.b32.xlu0 %v241, 124
      %v259 = vpop.permute.xlu0 %258
      %260 = vrot.lane.b32.xlu0 %v242, 124
      %v261 = vpop.permute.xlu0 %260
      %262 = vrot.lane.b32.xlu0 %v243, 124
      %v263 = vpop.permute.xlu0 %262
      %264 = vrot.lane.b32.xlu0 %v244, 124
      %v265 = vpop.permute.xlu0 %264
      %266 = vrot.lane.b32.xlu0 %v245, 124
      %v267 = vpop.permute.xlu0 %266
      %268 = vrot.lane.b32.xlu0 %v246, 124
      %v269 = vpop.permute.xlu0 %268
      %270 = vrot.lane.b32.xlu0 %v247, 124
      %v271 = vpop.permute.xlu0 %270
      %v280 = vadd.f32 %v240, %v257
      %v281 = vadd.f32 %v241, %v259
      %v282 = vadd.f32 %v242, %v261
      %v283 = vadd.f32 %v243, %v263
      %v284 = vadd.f32 %v244, %v265
      %v285 = vadd.f32 %v245, %v267
      %v286 = vadd.f32 %v246, %v269
      %v287 = vadd.f32 %v247, %v271
      %vm288 = vcmask 31744
      %289 = vst.msk [vmem:[#allocation2] sm:$0xff] %vm288, 0.0
      %vm290 = vcmask 25600
      %291 = vst.msk [vmem:[#allocation2 + $0x8] sm:$0x3] %vm290, 0.0
      %292 = vst.msk [vmem:[#allocation2 + $0x10] sm:$0xff] %vm288, 0.0
      %293 = vst.msk [vmem:[#allocation2 + $0x18] sm:$0x3] %vm290, 0.0
      %294 = vst.msk [vmem:[#allocation2 + $0x20] sm:$0xff] %vm288, 0.0
      %295 = vst.msk [vmem:[#allocation2 + $0x28] sm:$0x3] %vm290, 0.0
      %296 = vst.msk [vmem:[#allocation2 + $0x30] sm:$0xff] %vm288, 0.0
      %297 = vst.msk [vmem:[#allocation2 + $0x38] sm:$0x3] %vm290, 0.0
      %298 = vst.msk [vmem:[#allocation2 + $0x40] sm:$0xff] %vm288, 0.0
      %299 = vst.msk [vmem:[#allocation2 + $0x48] sm:$0x3] %vm290, 0.0
      %300 = vst.msk [vmem:[#allocation2 + $0x50] sm:$0xff] %vm288, 0.0
      %301 = vst.msk [vmem:[#allocation2 + $0x58] sm:$0x3] %vm290, 0.0
      %302 = vst.msk [vmem:[#allocation2 + $0x60] sm:$0xff] %vm288, 0.0
      %303 = vst.msk [vmem:[#allocation2 + $0x68] sm:$0x3] %vm290, 0.0
      %304 = vst.msk [vmem:[#allocation2 + $0x70] sm:$0xff] %vm288, 0.0
      %305 = vst.msk [vmem:[#allocation2 + $0x78] sm:$0x3] %vm290, 0.0
      %306 = vst.msk [vmem:[#allocation2 + $0x80] sm:$0xff] %vm288, 0.0
      %307 = vst.msk [vmem:[#allocation2 + $0x88] sm:$0x3] %vm290, 0.0
      %308 = vst.msk [vmem:[#allocation2 + $0x90] sm:$0xff] %vm288, 0.0
      %309 = vst.msk [vmem:[#allocation2 + $0x98] sm:$0x3] %vm290, 0.0
      %s310 = scalar_lea.vmem [#allocation2], 16
      %311 = vst.msk [vmem:[%s310 + $0x1] sm:$0xff] %vm288, %v280
      %312 = vst.msk [vmem:[%s310 + $0x11] sm:$0xff] %vm288, %v281
      %313 = vst.msk [vmem:[%s310 + $0x21] sm:$0xff] %vm288, %v282
      %314 = vst.msk [vmem:[%s310 + $0x31] sm:$0xff] %vm288, %v283
      %315 = vst.msk [vmem:[%s310 + $0x41] sm:$0xff] %vm288, %v284
      %316 = vst.msk [vmem:[%s310 + $0x51] sm:$0xff] %vm288, %v285
      %317 = vst.msk [vmem:[%s310 + $0x61] sm:$0xff] %vm288, %v286
      %318 = vst.msk [vmem:[%s310 + $0x71] sm:$0xff] %vm288, %v287
      %v319 = vld [vmem:[#allocation2] sm:$0xff]
      %v320 = vld [vmem:[#allocation2 + $0x10] sm:$0xff]
      %v321 = vld [vmem:[#allocation2 + $0x20] sm:$0xff]
      %v322 = vld [vmem:[#allocation2 + $0x30] sm:$0xff]
      %v323 = vld [vmem:[#allocation2 + $0x40] sm:$0xff]
      %v324 = vld [vmem:[#allocation2 + $0x50] sm:$0xff]
      %v325 = vld [vmem:[#allocation2 + $0x60] sm:$0xff]
      %v326 = vld [vmem:[#allocation2 + $0x70] sm:$0xff]
      %327 = vst.msk [vmem:[#allocation3] sm:$0xff] %vm288, %v319
      %328 = vst.msk [vmem:[#allocation3 + $0x8] sm:$0xff] %vm288, %v320
      %329 = vst.msk [vmem:[#allocation3 + $0x10] sm:$0xff] %vm288, %v321
      %330 = vst.msk [vmem:[#allocation3 + $0x18] sm:$0xff] %vm288, %v322
      %331 = vst.msk [vmem:[#allocation3 + $0x20] sm:$0xff] %vm288, %v323
      %332 = vst.msk [vmem:[#allocation3 + $0x28] sm:$0xff] %vm288, %v324
      %333 = vst.msk [vmem:[#allocation3 + $0x30] sm:$0xff] %vm288, %v325
      %334 = vst.msk [vmem:[#allocation3 + $0x38] sm:$0xff] %vm288, %v326
      %v335 = vld [vmem:[#allocation2 + $0x1] sm:$0xff]
      %v336 = vld [vmem:[#allocation2 + $0x11] sm:$0xff]
      %v337 = vld [vmem:[#allocation2 + $0x21] sm:$0xff]
      %v338 = vld [vmem:[#allocation2 + $0x31] sm:$0xff]
      %v339 = vld [vmem:[#allocation2 + $0x41] sm:$0xff]
      %v340 = vld [vmem:[#allocation2 + $0x51] sm:$0xff]
      %v341 = vld [vmem:[#allocation2 + $0x61] sm:$0xff]
      %v342 = vld [vmem:[#allocation2 + $0x71] sm:$0xff]
      %351 = vrot.lane.b32.xlu0 %v335, 4
      %v352 = vpop.permute.xlu0 %351
      %353 = vrot.lane.b32.xlu0 %v336, 4
      %v354 = vpop.permute.xlu0 %353
      %355 = vrot.lane.b32.xlu0 %v337, 4
      %v356 = vpop.permute.xlu0 %355
      %357 = vrot.lane.b32.xlu0 %v338, 4
      %v358 = vpop.permute.xlu0 %357
      %359 = vrot.lane.b32.xlu0 %v339, 4
      %v360 = vpop.permute.xlu0 %359
      %361 = vrot.lane.b32.xlu0 %v340, 4
      %v362 = vpop.permute.xlu0 %361
      %363 = vrot.lane.b32.xlu0 %v341, 4
      %v364 = vpop.permute.xlu0 %363
      %365 = vrot.lane.b32.xlu0 %v342, 4
      %v366 = vpop.permute.xlu0 %365
      %vm375 = vcmask 64544
      %376 = vst.msk [vmem:[#allocation3] sm:$0xff] %vm375, %v352
      %377 = vst.msk [vmem:[#allocation3 + $0x8] sm:$0xff] %vm375, %v354
      %378 = vst.msk [vmem:[#allocation3 + $0x10] sm:$0xff] %vm375, %v356
      %379 = vst.msk [vmem:[#allocation3 + $0x18] sm:$0xff] %vm375, %v358
      %380 = vst.msk [vmem:[#allocation3 + $0x20] sm:$0xff] %vm375, %v360
      %381 = vst.msk [vmem:[#allocation3 + $0x28] sm:$0xff] %vm375, %v362
      %382 = vst.msk [vmem:[#allocation3 + $0x30] sm:$0xff] %vm375, %v364
      %383 = vst.msk [vmem:[#allocation3 + $0x38] sm:$0xff] %vm375, %v366
      %v384 = vld [vmem:[#allocation2 + $0x2] sm:$0xff]
      %v385 = vld [vmem:[#allocation2 + $0x12] sm:$0xff]
      %v386 = vld [vmem:[#allocation2 + $0x22] sm:$0xff]
      %v387 = vld [vmem:[#allocation2 + $0x32] sm:$0xff]
      %v388 = vld [vmem:[#allocation2 + $0x42] sm:$0xff]
      %v389 = vld [vmem:[#allocation2 + $0x52] sm:$0xff]
      %v390 = vld [vmem:[#allocation2 + $0x62] sm:$0xff]
      %v391 = vld [vmem:[#allocation2 + $0x72] sm:$0xff]
      %400 = vrot.lane.b32.xlu0 %v384, 8
      %v401 = vpop.permute.xlu0 %400
      %402 = vrot.lane.b32.xlu0 %v385, 8
      %v403 = vpop.permute.xlu0 %402
      %404 = vrot.lane.b32.xlu0 %v386, 8
      %v405 = vpop.permute.xlu0 %404
      %406 = vrot.lane.b32.xlu0 %v387, 8
      %v407 = vpop.permute.xlu0 %406
      %408 = vrot.lane.b32.xlu0 %v388, 8
      %v409 = vpop.permute.xlu0 %408
      %410 = vrot.lane.b32.xlu0 %v389, 8
      %v411 = vpop.permute.xlu0 %410
      %412 = vrot.lane.b32.xlu0 %v390, 8
      %v413 = vpop.permute.xlu0 %412
      %414 = vrot.lane.b32.xlu0 %v391, 8
      %v415 = vpop.permute.xlu0 %414
      %vm424 = vcmask 97344
      %425 = vst.msk [vmem:[#allocation3] sm:$0xff] %vm424, %v401
      %426 = vst.msk [vmem:[#allocation3 + $0x8] sm:$0xff] %vm424, %v403
      %427 = vst.msk [vmem:[#allocation3 + $0x10] sm:$0xff] %vm424, %v405
      %428 = vst.msk [vmem:[#allocation3 + $0x18] sm:$0xff] %vm424, %v407
      %429 = vst.msk [vmem:[#allocation3 + $0x20] sm:$0xff] %vm424, %v409
      %430 = vst.msk [vmem:[#allocation3 + $0x28] sm:$0xff] %vm424, %v411
      %431 = vst.msk [vmem:[#allocation3 + $0x30] sm:$0xff] %vm424, %v413
      %432 = vst.msk [vmem:[#allocation3 + $0x38] sm:$0xff] %vm424, %v415
      %v433 = vld [vmem:[%s310] sm:$0xff]
      %v434 = vld [vmem:[%s310 + $0x10] sm:$0xff]
      %v435 = vld [vmem:[%s310 + $0x20] sm:$0xff]
      %v436 = vld [vmem:[%s310 + $0x30] sm:$0xff]
      %v437 = vld [vmem:[%s310 + $0x40] sm:$0xff]
      %v438 = vld [vmem:[%s310 + $0x50] sm:$0xff]
      %v439 = vld [vmem:[%s310 + $0x60] sm:$0xff]
      %v440 = vld [vmem:[%s310 + $0x70] sm:$0xff]
      %449 = vrot.lane.b32.xlu0 %v433, 12
      %v450 = vpop.permute.xlu0 %449
      %451 = vrot.lane.b32.xlu0 %v434, 12
      %v452 = vpop.permute.xlu0 %451
      %453 = vrot.lane.b32.xlu0 %v435, 12
      %v454 = vpop.permute.xlu0 %453
      %455 = vrot.lane.b32.xlu0 %v436, 12
      %v456 = vpop.permute.xlu0 %455
      %457 = vrot.lane.b32.xlu0 %v437, 12
      %v458 = vpop.permute.xlu0 %457
      %459 = vrot.lane.b32.xlu0 %v438, 12
      %v460 = vpop.permute.xlu0 %459
      %461 = vrot.lane.b32.xlu0 %v439, 12
      %v462 = vpop.permute.xlu0 %461
      %463 = vrot.lane.b32.xlu0 %v440, 12
      %v464 = vpop.permute.xlu0 %463
      %vm473 = vcmask 130144
      %474 = vst.msk [vmem:[#allocation3] sm:$0xff] %vm473, %v450
      %475 = vst.msk [vmem:[#allocation3 + $0x8] sm:$0xff] %vm473, %v452
      %476 = vst.msk [vmem:[#allocation3 + $0x10] sm:$0xff] %vm473, %v454
      %477 = vst.msk [vmem:[#allocation3 + $0x18] sm:$0xff] %vm473, %v456
      %478 = vst.msk [vmem:[#allocation3 + $0x20] sm:$0xff] %vm473, %v458
      %479 = vst.msk [vmem:[#allocation3 + $0x28] sm:$0xff] %vm473, %v460
      %480 = vst.msk [vmem:[#allocation3 + $0x30] sm:$0xff] %vm473, %v462
      %481 = vst.msk [vmem:[#allocation3 + $0x38] sm:$0xff] %vm473, %v464
      %v482 = vld [vmem:[%s310 + $0x1] sm:$0xff]
      %v483 = vld [vmem:[%s310 + $0x11] sm:$0xff]
      %v484 = vld [vmem:[%s310 + $0x21] sm:$0xff]
      %v485 = vld [vmem:[%s310 + $0x31] sm:$0xff]
      %v486 = vld [vmem:[%s310 + $0x41] sm:$0xff]
      %v487 = vld [vmem:[%s310 + $0x51] sm:$0xff]
      %v488 = vld [vmem:[%s310 + $0x61] sm:$0xff]
      %v489 = vld [vmem:[%s310 + $0x71] sm:$0xff]
      %498 = vrot.lane.b32.xlu0 %v482, 16
      %v499 = vpop.permute.xlu0 %498
      %500 = vrot.lane.b32.xlu0 %v483, 16
      %v501 = vpop.permute.xlu0 %500
      %502 = vrot.lane.b32.xlu0 %v484, 16
      %v503 = vpop.permute.xlu0 %502
      %504 = vrot.lane.b32.xlu0 %v485, 16
      %v505 = vpop.permute.xlu0 %504
      %506 = vrot.lane.b32.xlu0 %v486, 16
      %v507 = vpop.permute.xlu0 %506
      %508 = vrot.lane.b32.xlu0 %v487, 16
      %v509 = vpop.permute.xlu0 %508
      %510 = vrot.lane.b32.xlu0 %v488, 16
      %v511 = vpop.permute.xlu0 %510
      %512 = vrot.lane.b32.xlu0 %v489, 16
      %v513 = vpop.permute.xlu0 %512
      %vm522 = vcmask 162944
      %523 = vst.msk [vmem:[#allocation3] sm:$0xff] %vm522, %v499
      %524 = vst.msk [vmem:[#allocation3 + $0x8] sm:$0xff] %vm522, %v501
      %525 = vst.msk [vmem:[#allocation3 + $0x10] sm:$0xff] %vm522, %v503
      %526 = vst.msk [vmem:[#allocation3 + $0x18] sm:$0xff] %vm522, %v505
      %527 = vst.msk [vmem:[#allocation3 + $0x20] sm:$0xff] %vm522, %v507
      %528 = vst.msk [vmem:[#allocation3 + $0x28] sm:$0xff] %vm522, %v509
      %529 = vst.msk [vmem:[#allocation3 + $0x30] sm:$0xff] %vm522, %v511
      %530 = vst.msk [vmem:[#allocation3 + $0x38] sm:$0xff] %vm522, %v513
      %v531 = vld [vmem:[%s310 + $0x2] sm:$0xff]
      %v532 = vld [vmem:[%s310 + $0x12] sm:$0xff]
      %v533 = vld [vmem:[%s310 + $0x22] sm:$0xff]
      %v534 = vld [vmem:[%s310 + $0x32] sm:$0xff]
      %v535 = vld [vmem:[%s310 + $0x42] sm:$0xff]
      %v536 = vld [vmem:[%s310 + $0x52] sm:$0xff]
      %v537 = vld [vmem:[%s310 + $0x62] sm:$0xff]
      %v538 = vld [vmem:[%s310 + $0x72] sm:$0xff]
      %547 = vrot.lane.b32.xlu0 %v531, 20
      %v548 = vpop.permute.xlu0 %547
      %549 = vrot.lane.b32.xlu0 %v532, 20
      %v550 = vpop.permute.xlu0 %549
      %551 = vrot.lane.b32.xlu0 %v533, 20
      %v552 = vpop.permute.xlu0 %551
      %553 = vrot.lane.b32.xlu0 %v534, 20
      %v554 = vpop.permute.xlu0 %553
      %555 = vrot.lane.b32.xlu0 %v535, 20
      %v556 = vpop.permute.xlu0 %555
      %557 = vrot.lane.b32.xlu0 %v536, 20
      %v558 = vpop.permute.xlu0 %557
      %559 = vrot.lane.b32.xlu0 %v537, 20
      %v560 = vpop.permute.xlu0 %559
      %561 = vrot.lane.b32.xlu0 %v538, 20
      %v562 = vpop.permute.xlu0 %561
      %vm571 = vcmask 195744
      %572 = vst.msk [vmem:[#allocation3] sm:$0xff] %vm571, %v548
      %573 = vst.msk [vmem:[#allocation3 + $0x8] sm:$0xff] %vm571, %v550
      %574 = vst.msk [vmem:[#allocation3 + $0x10] sm:$0xff] %vm571, %v552
      %575 = vst.msk [vmem:[#allocation3 + $0x18] sm:$0xff] %vm571, %v554
      %576 = vst.msk [vmem:[#allocation3 + $0x20] sm:$0xff] %vm571, %v556
      %577 = vst.msk [vmem:[#allocation3 + $0x28] sm:$0xff] %vm571, %v558
      %578 = vst.msk [vmem:[#allocation3 + $0x30] sm:$0xff] %vm571, %v560
      %579 = vst.msk [vmem:[#allocation3 + $0x38] sm:$0xff] %vm571, %v562
      %s580 = scalar_lea.vmem [#allocation2], 32
      %v581 = vld [vmem:[%s580] sm:$0xff]
      %v582 = vld [vmem:[%s580 + $0x10] sm:$0xff]
      %v583 = vld [vmem:[%s580 + $0x20] sm:$0xff]
      %v584 = vld [vmem:[%s580 + $0x30] sm:$0xff]
      %v585 = vld [vmem:[%s580 + $0x40] sm:$0xff]
      %v586 = vld [vmem:[%s580 + $0x50] sm:$0xff]
      %v587 = vld [vmem:[%s580 + $0x60] sm:$0xff]
      %v588 = vld [vmem:[%s580 + $0x70] sm:$0xff]
      %597 = vrot.lane.b32.xlu0 %v581, 24
      %v598 = vpop.permute.xlu0 %597
      %599 = vrot.lane.b32.xlu0 %v582, 24
      %v600 = vpop.permute.xlu0 %599
      %601 = vrot.lane.b32.xlu0 %v583, 24
      %v602 = vpop.permute.xlu0 %601
      %603 = vrot.lane.b32.xlu0 %v584, 24
      %v604 = vpop.permute.xlu0 %603
      %605 = vrot.lane.b32.xlu0 %v585, 24
      %v606 = vpop.permute.xlu0 %605
      %607 = vrot.lane.b32.xlu0 %v586, 24
      %v608 = vpop.permute.xlu0 %607
      %609 = vrot.lane.b32.xlu0 %v587, 24
      %v610 = vpop.permute.xlu0 %609
      %611 = vrot.lane.b32.xlu0 %v588, 24
      %v612 = vpop.permute.xlu0 %611
      %vm621 = vcmask 228544
      %622 = vst.msk [vmem:[#allocation3] sm:$0xff] %vm621, %v598
      %623 = vst.msk [vmem:[#allocation3 + $0x8] sm:$0xff] %vm621, %v600
      %624 = vst.msk [vmem:[#allocation3 + $0x10] sm:$0xff] %vm621, %v602
      %625 = vst.msk [vmem:[#allocation3 + $0x18] sm:$0xff] %vm621, %v604
      %626 = vst.msk [vmem:[#allocation3 + $0x20] sm:$0xff] %vm621, %v606
      %627 = vst.msk [vmem:[#allocation3 + $0x28] sm:$0xff] %vm621, %v608
      %628 = vst.msk [vmem:[#allocation3 + $0x30] sm:$0xff] %vm621, %v610
      %629 = vst.msk [vmem:[#allocation3 + $0x38] sm:$0xff] %vm621, %v612
      %v630 = vld [vmem:[%s580 + $0x1] sm:$0xff]
      %v631 = vld [vmem:[%s580 + $0x11] sm:$0xff]
      %v632 = vld [vmem:[%s580 + $0x21] sm:$0xff]
      %v633 = vld [vmem:[%s580 + $0x31] sm:$0xff]
      %v634 = vld [vmem:[%s580 + $0x41] sm:$0xff]
      %v635 = vld [vmem:[%s580 + $0x51] sm:$0xff]
      %v636 = vld [vmem:[%s580 + $0x61] sm:$0xff]
      %v637 = vld [vmem:[%s580 + $0x71] sm:$0xff]
      %646 = vrot.lane.b32.xlu0 %v630, 28
      %v647 = vpop.permute.xlu0 %646
      %648 = vrot.lane.b32.xlu0 %v631, 28
      %v649 = vpop.permute.xlu0 %648
      %650 = vrot.lane.b32.xlu0 %v632, 28
      %v651 = vpop.permute.xlu0 %650
      %652 = vrot.lane.b32.xlu0 %v633, 28
      %v653 = vpop.permute.xlu0 %652
      %654 = vrot.lane.b32.xlu0 %v634, 28
      %v655 = vpop.permute.xlu0 %654
      %656 = vrot.lane.b32.xlu0 %v635, 28
      %v657 = vpop.permute.xlu0 %656
      %658 = vrot.lane.b32.xlu0 %v636, 28
      %v659 = vpop.permute.xlu0 %658
      %660 = vrot.lane.b32.xlu0 %v637, 28
      %v661 = vpop.permute.xlu0 %660
      %vm670 = vcmask 261344
      %671 = vst.msk [vmem:[#allocation3] sm:$0xff] %vm670, %v647
      %672 = vst.msk [vmem:[#allocation3 + $0x8] sm:$0xff] %vm670, %v649
      %673 = vst.msk [vmem:[#allocation3 + $0x10] sm:$0xff] %vm670, %v651
      %674 = vst.msk [vmem:[#allocation3 + $0x18] sm:$0xff] %vm670, %v653
      %675 = vst.msk [vmem:[#allocation3 + $0x20] sm:$0xff] %vm670, %v655
      %676 = vst.msk [vmem:[#allocation3 + $0x28] sm:$0xff] %vm670, %v657
      %677 = vst.msk [vmem:[#allocation3 + $0x30] sm:$0xff] %vm670, %v659
      %678 = vst.msk [vmem:[#allocation3 + $0x38] sm:$0xff] %vm670, %v661
      %v679 = vld [vmem:[%s580 + $0x2] sm:$0xff]
      %v680 = vld [vmem:[%s580 + $0x12] sm:$0xff]
      %v681 = vld [vmem:[%s580 + $0x22] sm:$0xff]
      %v682 = vld [vmem:[%s580 + $0x32] sm:$0xff]
      %v683 = vld [vmem:[%s580 + $0x42] sm:$0xff]
      %v684 = vld [vmem:[%s580 + $0x52] sm:$0xff]
      %v685 = vld [vmem:[%s580 + $0x62] sm:$0xff]
      %v686 = vld [vmem:[%s580 + $0x72] sm:$0xff]
      %695 = vrot.lane.b32.xlu0 %v679, 32
      %v696 = vpop.permute.xlu0 %695
      %697 = vrot.lane.b32.xlu0 %v680, 32
      %v698 = vpop.permute.xlu0 %697
      %699 = vrot.lane.b32.xlu0 %v681, 32
      %v700 = vpop.permute.xlu0 %699
      %701 = vrot.lane.b32.xlu0 %v682, 32
      %v702 = vpop.permute.xlu0 %701
      %703 = vrot.lane.b32.xlu0 %v683, 32
      %v704 = vpop.permute.xlu0 %703
      %705 = vrot.lane.b32.xlu0 %v684, 32
      %v706 = vpop.permute.xlu0 %705
      %707 = vrot.lane.b32.xlu0 %v685, 32
      %v708 = vpop.permute.xlu0 %707
      %709 = vrot.lane.b32.xlu0 %v686, 32
      %v710 = vpop.permute.xlu0 %709
      %vm719 = vcmask 294144
      %720 = vst.msk [vmem:[#allocation3] sm:$0xff] %vm719, %v696
      %721 = vst.msk [vmem:[#allocation3 + $0x8] sm:$0xff] %vm719, %v698
      %722 = vst.msk [vmem:[#allocation3 + $0x10] sm:$0xff] %vm719, %v700
      %723 = vst.msk [vmem:[#allocation3 + $0x18] sm:$0xff] %vm719, %v702
      %724 = vst.msk [vmem:[#allocation3 + $0x20] sm:$0xff] %vm719, %v704
      %725 = vst.msk [vmem:[#allocation3 + $0x28] sm:$0xff] %vm719, %v706
      %726 = vst.msk [vmem:[#allocation3 + $0x30] sm:$0xff] %vm719, %v708
      %727 = vst.msk [vmem:[#allocation3 + $0x38] sm:$0xff] %vm719, %v710
      %v728 = vld [vmem:[#allocation3] sm:$0xff]
      %v729 = vld [vmem:[#allocation3 + $0x8] sm:$0xff]
      %v730 = vld [vmem:[#allocation3 + $0x10] sm:$0xff]
      %v731 = vld [vmem:[#allocation3 + $0x18] sm:$0xff]
      %v732 = vld [vmem:[#allocation3 + $0x20] sm:$0xff]
      %v733 = vld [vmem:[#allocation3 + $0x28] sm:$0xff]
      %v734 = vld [vmem:[#allocation3 + $0x30] sm:$0xff]
      %v735 = vld [vmem:[#allocation3 + $0x38] sm:$0xff]
      %v736 = vld [vmem:[%s1] sm:$0xff]
      %v737 = vld [vmem:[%s1 + $0x8] sm:$0xff]
      %v738 = vld [vmem:[%s1 + $0x10] sm:$0xff]
      %v739 = vld [vmem:[%s1 + $0x18] sm:$0xff]
      %v740 = vld [vmem:[%s1 + $0x20] sm:$0xf]
      %v741 = vld [vmem:[%s2] sm:$0x1]
      %v743 = vlaneseq
      %v744 = vshrl.u32 %v743, 7
      %v745 = vsub.s32 0, %v744
      %v746 = vrot.slane %v741, %v745
      %vm748 = vcmask 293888
      %v750 = vsel %vm748, %v728, 0
      %v753 = vsel %vm748, %v729, 0
      %v756 = vsel %vm748, %v730, 0
      %v759 = vsel %vm748, %v731, 0
      %v762 = vsel %vm748, %v732, 0
      %v765 = vsel %vm748, %v733, 0
      %v768 = vsel %vm748, %v734, 0
      %v771 = vsel %vm748, %v735, 0
      %vm773 = vcmask 1043456
      %v775 = vsel %vm773, %v740, 0
      %777 = vmatprep.subr.mxu0 0.0
      %778 = vmatpush1.msra.mxu0 %v736
      %779 = vmatprep.subr.mxu0 0.0
      %780 = vmatpush1.msra.mxu0 %v737
      %781 = vmatprep.subr.mxu0 0.0
      %782 = vmatpush1.msra.mxu0 %v738
      %783 = vmatprep.subr.mxu0 0.0
      %784 = vmatpush1.msra.mxu0 %v739
      %785 = vmatprep.subr.mxu0 0.0
      %786 = vmatpush1.msra.mxu0 %v775
      %787 = vmatprep.subr.mxu0 0.0
      %788 = vmatpush1.msra.mxu0 0.0
      %789 = vmatprep.subr.mxu0 0.0
      %790 = vmatpush1.msra.mxu0 0.0
      %791 = vmatprep.subr.mxu0 0.0
      %792 = vmatpush1.msra.mxu0 0.0
      %793 = vmatprep.subr.mxu0 0.0
      %794 = vmatpush1.msra.mxu0 0.0
      %795 = vmatprep.subr.mxu0 0.0
      %796 = vmatpush1.msra.mxu0 0.0
      %797 = vmatprep.subr.mxu0 0.0
      %798 = vmatpush1.msra.mxu0 0.0
      %799 = vmatprep.subr.mxu0 0.0
      %800 = vmatpush1.msra.mxu0 0.0
      %801 = vmatprep.subr.mxu0 0.0
      %802 = vmatpush1.msra.mxu0 0.0
      %803 = vmatprep.subr.mxu0 0.0
      %804 = vmatpush1.msra.mxu0 0.0
      %805 = vmatprep.subr.mxu0 0.0
      %806 = vmatpush1.msra.mxu0 0.0
      %807 = vmatprep.subr.mxu0 0.0
      %808 = vmatpush1.msra.mxu0 0.0
      %809 = vmatprep.subr.mxu0 0.0
      %810 = vmatpush1.msra.mxu0 0.0
      %811 = vmatprep.subr.mxu0 0.0
      %812 = vmatpush1.msra.mxu0 0.0
      %813 = vmatprep.subr.mxu0 0.0
      %814 = vmatpush1.msra.mxu0 0.0
      %815 = vmatprep.subr.mxu0 0.0
      %816 = vmatpush1.msra.mxu0 0.0
      %817 = vmatprep.subr.mxu0 0.0
      %818 = vmatpush1.msra.mxu0 0.0
      %819 = vmatprep.subr.mxu0 0.0
      %820 = vmatpush1.msra.mxu0 0.0
      %821 = vmatprep.subr.mxu0 0.0
      %822 = vmatpush1.msra.mxu0 0.0
      %823 = vmatprep.subr.mxu0 0.0
      %824 = vmatpush1.msra.mxu0 0.0
      %825 = vmatprep.subr.mxu0 0.0
      %826 = vmatpush1.msra.mxu0 0.0
      %827 = vmatprep.subr.mxu0 0.0
      %828 = vmatpush1.msra.mxu0 0.0
      %829 = vmatprep.subr.mxu0 0.0
      %830 = vmatpush1.msra.mxu0 0.0
      %831 = vmatprep.subr.mxu0 0.0
      %832 = vmatpush1.msra.mxu0 0.0
      %833 = vmatprep.subr.mxu0 0.0
      %834 = vmatpush1.msra.mxu0 0.0
      %835 = vmatprep.subr.mxu0 0.0
      %836 = vmatpush1.msra.mxu0 0.0
      %837 = vmatprep.subr.mxu0 0.0
      %838 = vmatpush1.msra.mxu0 0.0
      %839 = vmatprep.subr.mxu0 0.0
      %840 = vmatpush1.msra.mxu0 0.0
      %841 = vmatprep.mubr.f32.mxu0 0.0
      %842 = vmatmul.mubr.f32.gmra.mrb[0].mxu0 %v750
      %v843 = vpop.f32.mrb[0].mxu0
      %v844 = vadd.f32 %v746, %v843
      %v845 = vpop.f32.mrb[0].mxu0
      %846 = vmatprep.mubr.f32.mxu0 0.0
      %847 = vmatmul.mubr.f32.gmra.mrb[0].mxu0 %v753
      %v848 = vpop.f32.mrb[0].mxu0
      %v849 = vadd.f32 %v746, %v848
      %v850 = vpop.f32.mrb[0].mxu0
      %851 = vmatprep.mubr.f32.mxu0 0.0
      %852 = vmatmul.mubr.f32.gmra.mrb[0].mxu0 %v756
      %v853 = vpop.f32.mrb[0].mxu0
      %v854 = vadd.f32 %v746, %v853
      %v855 = vpop.f32.mrb[0].mxu0
      %856 = vmatprep.mubr.f32.mxu0 0.0
      %857 = vmatmul.mubr.f32.gmra.mrb[0].mxu0 %v759
      %v858 = vpop.f32.mrb[0].mxu0
      %v859 = vadd.f32 %v746, %v858
      %v860 = vpop.f32.mrb[0].mxu0
      %861 = vmatprep.mubr.f32.mxu0 0.0
      %862 = vmatmul.mubr.f32.gmra.mrb[0].mxu0 %v762
      %v863 = vpop.f32.mrb[0].mxu0
      %v864 = vadd.f32 %v746, %v863
      %v865 = vpop.f32.mrb[0].mxu0
      %866 = vmatprep.mubr.f32.mxu0 0.0
      %867 = vmatmul.mubr.f32.gmra.mrb[0].mxu0 %v765
      %v868 = vpop.f32.mrb[0].mxu0
      %v869 = vadd.f32 %v746, %v868
      %v870 = vpop.f32.mrb[0].mxu0
      %871 = vmatprep.mubr.f32.mxu0 0.0
      %872 = vmatmul.mubr.f32.gmra.mrb[0].mxu0 %v768
      %v873 = vpop.f32.mrb[0].mxu0
      %v874 = vadd.f32 %v746, %v873
      %v875 = vpop.f32.mrb[0].mxu0
      %876 = vmatprep.mubr.f32.mxu0 0.0
      %877 = vmatmul.mubr.f32.gmra.mrb[0].mxu0 %v771
      %v878 = vpop.f32.mrb[0].mxu0
      %v879 = vadd.f32 %v746, %v878
      %v880 = vpop.f32.mrb[0].mxu0
      %881 = vdwg.mxu0
      %v882 = vmul.f32 %v844, 0.5
      %v883 = vmul.f32 %v849, 0.5
      %v884 = vmul.f32 %v854, 0.5
      %v885 = vmul.f32 %v859, 0.5
      %v886 = vmul.f32 %v864, 0.5
      %v887 = vmul.f32 %v869, 0.5
      %v888 = vmul.f32 %v874, 0.5
      %v889 = vmul.f32 %v879, 0.5
      %v890 = vmul.f32 %v844, 0.70710677
      %v891 = vmul.f32 %v849, 0.70710677
      %v892 = vmul.f32 %v854, 0.70710677
      %v893 = vmul.f32 %v859, 0.70710677
      %v894 = vmul.f32 %v864, 0.70710677
      %v895 = vmul.f32 %v869, 0.70710677
      %v896 = vmul.f32 %v874, 0.70710677
      %v897 = vmul.f32 %v879, 0.70710677
      %v898 = verf.f32.pop %v890
      %v899 = verf.f32.pop %v891
      %v900 = verf.f32.pop %v892
      %v901 = verf.f32.pop %v893
      %v902 = verf.f32.pop %v894
      %v903 = verf.f32.pop %v895
      %v904 = verf.f32.pop %v896
      %v905 = verf.f32.pop %v897
      %v906 = vadd.f32 %v898, 1.0
      %v907 = vadd.f32 %v899, 1.0
      %v908 = vadd.f32 %v900, 1.0
      %v909 = vadd.f32 %v901, 1.0
      %v910 = vadd.f32 %v902, 1.0
      %v911 = vadd.f32 %v903, 1.0
      %v912 = vadd.f32 %v904, 1.0
      %v913 = vadd.f32 %v905, 1.0
      %v914 = vmul.f32 %v882, %v906
      %v915 = vmul.f32 %v883, %v907
      %v916 = vmul.f32 %v884, %v908
      %v917 = vmul.f32 %v885, %v909
      %v918 = vmul.f32 %v886, %v910
      %v919 = vmul.f32 %v887, %v911
      %v920 = vmul.f32 %v888, %v912
      %v921 = vmul.f32 %v889, %v913
      %vm922 = vcmask 64512
      %923 = vst.msk [vmem:[#allocation4] sm:$0xff] %vm922, 0.0
      %vm924 = vcmask 58368
      %925 = vst.msk [vmem:[#allocation4 + $0x8] sm:$0x3] %vm924, 0.0
      %926 = vst.msk [vmem:[#allocation4 + $0x10] sm:$0xff] %vm922, 0.0
      %927 = vst.msk [vmem:[#allocation4 + $0x18] sm:$0x3] %vm924, 0.0
      %928 = vst.msk [vmem:[#allocation4 + $0x20] sm:$0xff] %vm922, 0.0
      %929 = vst.msk [vmem:[#allocation4 + $0x28] sm:$0x3] %vm924, 0.0
      %930 = vst.msk [vmem:[#allocation4 + $0x30] sm:$0xff] %vm922, 0.0
      %931 = vst.msk [vmem:[#allocation4 + $0x38] sm:$0x3] %vm924, 0.0
      %932 = vst.msk [vmem:[#allocation4 + $0x40] sm:$0xff] %vm922, 0.0
      %933 = vst.msk [vmem:[#allocation4 + $0x48] sm:$0x3] %vm924, 0.0
      %934 = vst.msk [vmem:[#allocation4 + $0x50] sm:$0xff] %vm922, 0.0
      %935 = vst.msk [vmem:[#allocation4 + $0x58] sm:$0x3] %vm924, 0.0
      %936 = vst.msk [vmem:[#allocation4 + $0x60] sm:$0xff] %vm922, 0.0
      %937 = vst.msk [vmem:[#allocation4 + $0x68] sm:$0x3] %vm924, 0.0
      %938 = vst.msk [vmem:[#allocation4 + $0x70] sm:$0xff] %vm922, 0.0
      %939 = vst.msk [vmem:[#allocation4 + $0x78] sm:$0x3] %vm924, 0.0
      %940 = vst.msk [vmem:[#allocation4 + $0x80] sm:$0xff] %vm922, 0.0
      %941 = vst.msk [vmem:[#allocation4 + $0x88] sm:$0x3] %vm924, 0.0
      %942 = vst.msk [vmem:[#allocation4 + $0x90] sm:$0xff] %vm922, 0.0
      %943 = vst.msk [vmem:[#allocation4 + $0x98] sm:$0x3] %vm924, 0.0
      %s944 = scalar_lea.vmem [#allocation4], 16
      %945 = vst.msk [vmem:[%s944 + $0x1] sm:$0xff] %vm922, %v914
      %946 = vst.msk [vmem:[%s944 + $0x11] sm:$0xff] %vm922, %v915
      %947 = vst.msk [vmem:[%s944 + $0x21] sm:$0xff] %vm922, %v916
      %948 = vst.msk [vmem:[%s944 + $0x31] sm:$0xff] %vm922, %v917
      %949 = vst.msk [vmem:[%s944 + $0x41] sm:$0xff] %vm922, %v918
      %950 = vst.msk [vmem:[%s944 + $0x51] sm:$0xff] %vm922, %v919
      %951 = vst.msk [vmem:[%s944 + $0x61] sm:$0xff] %vm922, %v920
      %952 = vst.msk [vmem:[%s944 + $0x71] sm:$0xff] %vm922, %v921
      %v953 = vld [vmem:[#allocation4] sm:$0xff]
      %v954 = vld [vmem:[#allocation4 + $0x10] sm:$0xff]
      %v955 = vld [vmem:[#allocation4 + $0x20] sm:$0xff]
      %v956 = vld [vmem:[#allocation4 + $0x30] sm:$0xff]
      %v957 = vld [vmem:[#allocation4 + $0x40] sm:$0xff]
      %v958 = vld [vmem:[#allocation4 + $0x50] sm:$0xff]
      %v959 = vld [vmem:[#allocation4 + $0x60] sm:$0xff]
      %v960 = vld [vmem:[#allocation4 + $0x70] sm:$0xff]
      %961 = vst.msk [vmem:[#allocation5] sm:$0xff] %vm922, %v953
      %962 = vst.msk [vmem:[#allocation5 + $0x8] sm:$0xff] %vm922, %v954
      %963 = vst.msk [vmem:[#allocation5 + $0x10] sm:$0xff] %vm922, %v955
      %964 = vst.msk [vmem:[#allocation5 + $0x18] sm:$0xff] %vm922, %v956
      %965 = vst.msk [vmem:[#allocation5 + $0x20] sm:$0xff] %vm922, %v957
      %966 = vst.msk [vmem:[#allocation5 + $0x28] sm:$0xff] %vm922, %v958
      %967 = vst.msk [vmem:[#allocation5 + $0x30] sm:$0xff] %vm922, %v959
      %968 = vst.msk [vmem:[#allocation5 + $0x38] sm:$0xff] %vm922, %v960
      %v969 = vld [vmem:[#allocation4 + $0x1] sm:$0xff]
      %v970 = vld [vmem:[#allocation4 + $0x11] sm:$0xff]
      %v971 = vld [vmem:[#allocation4 + $0x21] sm:$0xff]
      %v972 = vld [vmem:[#allocation4 + $0x31] sm:$0xff]
      %v973 = vld [vmem:[#allocation4 + $0x41] sm:$0xff]
      %v974 = vld [vmem:[#allocation4 + $0x51] sm:$0xff]
      %v975 = vld [vmem:[#allocation4 + $0x61] sm:$0xff]
      %v976 = vld [vmem:[#allocation4 + $0x71] sm:$0xff]
      %985 = vrot.lane.b32.xlu0 %v969, 8
      %v986 = vpop.permute.xlu0 %985
      %987 = vrot.lane.b32.xlu0 %v970, 8
      %v988 = vpop.permute.xlu0 %987
      %989 = vrot.lane.b32.xlu0 %v971, 8
      %v990 = vpop.permute.xlu0 %989
      %991 = vrot.lane.b32.xlu0 %v972, 8
      %v992 = vpop.permute.xlu0 %991
      %993 = vrot.lane.b32.xlu0 %v973, 8
      %v994 = vpop.permute.xlu0 %993
      %995 = vrot.lane.b32.xlu0 %v974, 8
      %v996 = vpop.permute.xlu0 %995
      %997 = vrot.lane.b32.xlu0 %v975, 8
      %v998 = vpop.permute.xlu0 %997
      %999 = vrot.lane.b32.xlu0 %v976, 8
      %v1000 = vpop.permute.xlu0 %999
      %vm1009 = vcmask 130112
      %1010 = vst.msk [vmem:[#allocation5] sm:$0xff] %vm1009, %v986
      %1011 = vst.msk [vmem:[#allocation5 + $0x8] sm:$0xff] %vm1009, %v988
      %1012 = vst.msk [vmem:[#allocation5 + $0x10] sm:$0xff] %vm1009, %v990
      %1013 = vst.msk [vmem:[#allocation5 + $0x18] sm:$0xff] %vm1009, %v992
      %1014 = vst.msk [vmem:[#allocation5 + $0x20] sm:$0xff] %vm1009, %v994
      %1015 = vst.msk [vmem:[#allocation5 + $0x28] sm:$0xff] %vm1009, %v996
      %1016 = vst.msk [vmem:[#allocation5 + $0x30] sm:$0xff] %vm1009, %v998
      %1017 = vst.msk [vmem:[#allocation5 + $0x38] sm:$0xff] %vm1009, %v1000
      %v1018 = vld [vmem:[#allocation4 + $0x2] sm:$0xff]
      %v1019 = vld [vmem:[#allocation4 + $0x12] sm:$0xff]
      %v1020 = vld [vmem:[#allocation4 + $0x22] sm:$0xff]
      %v1021 = vld [vmem:[#allocation4 + $0x32] sm:$0xff]
      %v1022 = vld [vmem:[#allocation4 + $0x42] sm:$0xff]
      %v1023 = vld [vmem:[#allocation4 + $0x52] sm:$0xff]
      %v1024 = vld [vmem:[#allocation4 + $0x62] sm:$0xff]
      %v1025 = vld [vmem:[#allocation4 + $0x72] sm:$0xff]
      %1034 = vrot.lane.b32.xlu0 %v1018, 16
      %v1035 = vpop.permute.xlu0 %1034
      %1036 = vrot.lane.b32.xlu0 %v1019, 16
      %v1037 = vpop.permute.xlu0 %1036
      %1038 = vrot.lane.b32.xlu0 %v1020, 16
      %v1039 = vpop.permute.xlu0 %1038
      %1040 = vrot.lane.b32.xlu0 %v1021, 16
      %v1041 = vpop.permute.xlu0 %1040
      %1042 = vrot.lane.b32.xlu0 %v1022, 16
      %v1043 = vpop.permute.xlu0 %1042
      %1044 = vrot.lane.b32.xlu0 %v1023, 16
      %v1045 = vpop.permute.xlu0 %1044
      %1046 = vrot.lane.b32.xlu0 %v1024, 16
      %v1047 = vpop.permute.xlu0 %1046
      %1048 = vrot.lane.b32.xlu0 %v1025, 16
      %v1049 = vpop.permute.xlu0 %1048
      %vm1058 = vcmask 195712
      %1059 = vst.msk [vmem:[#allocation5] sm:$0xff] %vm1058, %v1035
      %1060 = vst.msk [vmem:[#allocation5 + $0x8] sm:$0xff] %vm1058, %v1037
      %1061 = vst.msk [vmem:[#allocation5 + $0x10] sm:$0xff] %vm1058, %v1039
      %1062 = vst.msk [vmem:[#allocation5 + $0x18] sm:$0xff] %vm1058, %v1041
      %1063 = vst.msk [vmem:[#allocation5 + $0x20] sm:$0xff] %vm1058, %v1043
      %1064 = vst.msk [vmem:[#allocation5 + $0x28] sm:$0xff] %vm1058, %v1045
      %1065 = vst.msk [vmem:[#allocation5 + $0x30] sm:$0xff] %vm1058, %v1047
      %1066 = vst.msk [vmem:[#allocation5 + $0x38] sm:$0xff] %vm1058, %v1049
      %v1067 = vld [vmem:[%s944] sm:$0xff]
      %v1068 = vld [vmem:[%s944 + $0x10] sm:$0xff]
      %v1069 = vld [vmem:[%s944 + $0x20] sm:$0xff]
      %v1070 = vld [vmem:[%s944 + $0x30] sm:$0xff]
      %v1071 = vld [vmem:[%s944 + $0x40] sm:$0xff]
      %v1072 = vld [vmem:[%s944 + $0x50] sm:$0xff]
      %v1073 = vld [vmem:[%s944 + $0x60] sm:$0xff]
      %v1074 = vld [vmem:[%s944 + $0x70] sm:$0xff]
      %1083 = vrot.lane.b32.xlu0 %v1067, 24
      %v1084 = vpop.permute.xlu0 %1083
      %1085 = vrot.lane.b32.xlu0 %v1068, 24
      %v1086 = vpop.permute.xlu0 %1085
      %1087 = vrot.lane.b32.xlu0 %v1069, 24
      %v1088 = vpop.permute.xlu0 %1087
      %1089 = vrot.lane.b32.xlu0 %v1070, 24
      %v1090 = vpop.permute.xlu0 %1089
      %1091 = vrot.lane.b32.xlu0 %v1071, 24
      %v1092 = vpop.permute.xlu0 %1091
      %1093 = vrot.lane.b32.xlu0 %v1072, 24
      %v1094 = vpop.permute.xlu0 %1093
      %1095 = vrot.lane.b32.xlu0 %v1073, 24
      %v1096 = vpop.permute.xlu0 %1095
      %1097 = vrot.lane.b32.xlu0 %v1074, 24
      %v1098 = vpop.permute.xlu0 %1097
      %vm1107 = vcmask 261312
      %1108 = vst.msk [vmem:[#allocation5] sm:$0xff] %vm1107, %v1084
      %1109 = vst.msk [vmem:[#allocation5 + $0x8] sm:$0xff] %vm1107, %v1086
      %1110 = vst.msk [vmem:[#allocation5 + $0x10] sm:$0xff] %vm1107, %v1088
      %1111 = vst.msk [vmem:[#allocation5 + $0x18] sm:$0xff] %vm1107, %v1090
      %1112 = vst.msk [vmem:[#allocation5 + $0x20] sm:$0xff] %vm1107, %v1092
      %1113 = vst.msk [vmem:[#allocation5 + $0x28] sm:$0xff] %vm1107, %v1094
      %1114 = vst.msk [vmem:[#allocation5 + $0x30] sm:$0xff] %vm1107, %v1096
      %1115 = vst.msk [vmem:[#allocation5 + $0x38] sm:$0xff] %vm1107, %v1098
      %v1116 = vld [vmem:[%s944 + $0x1] sm:$0xff]
      %v1117 = vld [vmem:[%s944 + $0x11] sm:$0xff]
      %v1118 = vld [vmem:[%s944 + $0x21] sm:$0xff]
      %v1119 = vld [vmem:[%s944 + $0x31] sm:$0xff]
      %v1120 = vld [vmem:[%s944 + $0x41] sm:$0xff]
      %v1121 = vld [vmem:[%s944 + $0x51] sm:$0xff]
      %v1122 = vld [vmem:[%s944 + $0x61] sm:$0xff]
      %v1123 = vld [vmem:[%s944 + $0x71] sm:$0xff]
      %1132 = vrot.lane.b32.xlu0 %v1116, 32
      %v1133 = vpop.permute.xlu0 %1132
      %1134 = vrot.lane.b32.xlu0 %v1117, 32
      %v1135 = vpop.permute.xlu0 %1134
      %1136 = vrot.lane.b32.xlu0 %v1118, 32
      %v1137 = vpop.permute.xlu0 %1136
      %1138 = vrot.lane.b32.xlu0 %v1119, 32
      %v1139 = vpop.permute.xlu0 %1138
      %1140 = vrot.lane.b32.xlu0 %v1120, 32
      %v1141 = vpop.permute.xlu0 %1140
      %1142 = vrot.lane.b32.xlu0 %v1121, 32
      %v1143 = vpop.permute.xlu0 %1142
      %1144 = vrot.lane.b32.xlu0 %v1122, 32
      %v1145 = vpop.permute.xlu0 %1144
      %1146 = vrot.lane.b32.xlu0 %v1123, 32
      %v1147 = vpop.permute.xlu0 %1146
      %vm1156 = vcmask 326912
      %1157 = vst.msk [vmem:[#allocation5] sm:$0xff] %vm1156, %v1133
      %1158 = vst.msk [vmem:[#allocation5 + $0x8] sm:$0xff] %vm1156, %v1135
      %1159 = vst.msk [vmem:[#allocation5 + $0x10] sm:$0xff] %vm1156, %v1137
      %1160 = vst.msk [vmem:[#allocation5 + $0x18] sm:$0xff] %vm1156, %v1139
      %1161 = vst.msk [vmem:[#allocation5 + $0x20] sm:$0xff] %vm1156, %v1141
      %1162 = vst.msk [vmem:[#allocation5 + $0x28] sm:$0xff] %vm1156, %v1143
      %1163 = vst.msk [vmem:[#allocation5 + $0x30] sm:$0xff] %vm1156, %v1145
      %1164 = vst.msk [vmem:[#allocation5 + $0x38] sm:$0xff] %vm1156, %v1147
      %v1165 = vld [vmem:[%s944 + $0x2] sm:$0xff]
      %v1166 = vld [vmem:[%s944 + $0x12] sm:$0xff]
      %v1167 = vld [vmem:[%s944 + $0x22] sm:$0xff]
      %v1168 = vld [vmem:[%s944 + $0x32] sm:$0xff]
      %v1169 = vld [vmem:[%s944 + $0x42] sm:$0xff]
      %v1170 = vld [vmem:[%s944 + $0x52] sm:$0xff]
      %v1171 = vld [vmem:[%s944 + $0x62] sm:$0xff]
      %v1172 = vld [vmem:[%s944 + $0x72] sm:$0xff]
      %1181 = vrot.lane.b32.xlu0 %v1165, 40
      %v1182 = vpop.permute.xlu0 %1181
      %1183 = vrot.lane.b32.xlu0 %v1166, 40
      %v1184 = vpop.permute.xlu0 %1183
      %1185 = vrot.lane.b32.xlu0 %v1167, 40
      %v1186 = vpop.permute.xlu0 %1185
      %1187 = vrot.lane.b32.xlu0 %v1168, 40
      %v1188 = vpop.permute.xlu0 %1187
      %1189 = vrot.lane.b32.xlu0 %v1169, 40
      %v1190 = vpop.permute.xlu0 %1189
      %1191 = vrot.lane.b32.xlu0 %v1170, 40
      %v1192 = vpop.permute.xlu0 %1191
      %1193 = vrot.lane.b32.xlu0 %v1171, 40
      %v1194 = vpop.permute.xlu0 %1193
      %1195 = vrot.lane.b32.xlu0 %v1172, 40
      %v1196 = vpop.permute.xlu0 %1195
      %vm1205 = vcmask 392512
      %1206 = vst.msk [vmem:[#allocation5] sm:$0xff] %vm1205, %v1182
      %1207 = vst.msk [vmem:[#allocation5 + $0x8] sm:$0xff] %vm1205, %v1184
      %1208 = vst.msk [vmem:[#allocation5 + $0x10] sm:$0xff] %vm1205, %v1186
      %1209 = vst.msk [vmem:[#allocation5 + $0x18] sm:$0xff] %vm1205, %v1188
      %1210 = vst.msk [vmem:[#allocation5 + $0x20] sm:$0xff] %vm1205, %v1190
      %1211 = vst.msk [vmem:[#allocation5 + $0x28] sm:$0xff] %vm1205, %v1192
      %1212 = vst.msk [vmem:[#allocation5 + $0x30] sm:$0xff] %vm1205, %v1194
      %1213 = vst.msk [vmem:[#allocation5 + $0x38] sm:$0xff] %vm1205, %v1196
      %s1214 = scalar_lea.vmem [#allocation4], 32
      %v1215 = vld [vmem:[%s1214] sm:$0xff]
      %v1216 = vld [vmem:[%s1214 + $0x10] sm:$0xff]
      %v1217 = vld [vmem:[%s1214 + $0x20] sm:$0xff]
      %v1218 = vld [vmem:[%s1214 + $0x30] sm:$0xff]
      %v1219 = vld [vmem:[%s1214 + $0x40] sm:$0xff]
      %v1220 = vld [vmem:[%s1214 + $0x50] sm:$0xff]
      %v1221 = vld [vmem:[%s1214 + $0x60] sm:$0xff]
      %v1222 = vld [vmem:[%s1214 + $0x70] sm:$0xff]
      %1231 = vrot.lane.b32.xlu0 %v1215, 48
      %v1232 = vpop.permute.xlu0 %1231
      %1233 = vrot.lane.b32.xlu0 %v1216, 48
      %v1234 = vpop.permute.xlu0 %1233
      %1235 = vrot.lane.b32.xlu0 %v1217, 48
      %v1236 = vpop.permute.xlu0 %1235
      %1237 = vrot.lane.b32.xlu0 %v1218, 48
      %v1238 = vpop.permute.xlu0 %1237
      %1239 = vrot.lane.b32.xlu0 %v1219, 48
      %v1240 = vpop.permute.xlu0 %1239
      %1241 = vrot.lane.b32.xlu0 %v1220, 48
      %v1242 = vpop.permute.xlu0 %1241
      %1243 = vrot.lane.b32.xlu0 %v1221, 48
      %v1244 = vpop.permute.xlu0 %1243
      %1245 = vrot.lane.b32.xlu0 %v1222, 48
      %v1246 = vpop.permute.xlu0 %1245
      %vm1255 = vcmask 458112
      %1256 = vst.msk [vmem:[#allocation5] sm:$0xff] %vm1255, %v1232
      %1257 = vst.msk [vmem:[#allocation5 + $0x8] sm:$0xff] %vm1255, %v1234
      %1258 = vst.msk [vmem:[#allocation5 + $0x10] sm:$0xff] %vm1255, %v1236
      %1259 = vst.msk [vmem:[#allocation5 + $0x18] sm:$0xff] %vm1255, %v1238
      %1260 = vst.msk [vmem:[#allocation5 + $0x20] sm:$0xff] %vm1255, %v1240
      %1261 = vst.msk [vmem:[#allocation5 + $0x28] sm:$0xff] %vm1255, %v1242
      %1262 = vst.msk [vmem:[#allocation5 + $0x30] sm:$0xff] %vm1255, %v1244
      %1263 = vst.msk [vmem:[#allocation5 + $0x38] sm:$0xff] %vm1255, %v1246
      %v1264 = vld [vmem:[%s1214 + $0x1] sm:$0xff]
      %v1265 = vld [vmem:[%s1214 + $0x11] sm:$0xff]
      %v1266 = vld [vmem:[%s1214 + $0x21] sm:$0xff]
      %v1267 = vld [vmem:[%s1214 + $0x31] sm:$0xff]
      %v1268 = vld [vmem:[%s1214 + $0x41] sm:$0xff]
      %v1269 = vld [vmem:[%s1214 + $0x51] sm:$0xff]
      %v1270 = vld [vmem:[%s1214 + $0x61] sm:$0xff]
      %v1271 = vld [vmem:[%s1214 + $0x71] sm:$0xff]
      %1280 = vrot.lane.b32.xlu0 %v1264, 56
      %v1281 = vpop.permute.xlu0 %1280
      %1282 = vrot.lane.b32.xlu0 %v1265, 56
      %v1283 = vpop.permute.xlu0 %1282
      %1284 = vrot.lane.b32.xlu0 %v1266, 56
      %v1285 = vpop.permute.xlu0 %1284
      %1286 = vrot.lane.b32.xlu0 %v1267, 56
      %v1287 = vpop.permute.xlu0 %1286
      %1288 = vrot.lane.b32.xlu0 %v1268, 56
      %v1289 = vpop.permute.xlu0 %1288
      %1290 = vrot.lane.b32.xlu0 %v1269, 56
      %v1291 = vpop.permute.xlu0 %1290
      %1292 = vrot.lane.b32.xlu0 %v1270, 56
      %v1293 = vpop.permute.xlu0 %1292
      %1294 = vrot.lane.b32.xlu0 %v1271, 56
      %v1295 = vpop.permute.xlu0 %1294
      %vm1304 = vcmask 523712
      %1305 = vst.msk [vmem:[#allocation5] sm:$0xff] %vm1304, %v1281
      %1306 = vst.msk [vmem:[#allocation5 + $0x8] sm:$0xff] %vm1304, %v1283
      %1307 = vst.msk [vmem:[#allocation5 + $0x10] sm:$0xff] %vm1304, %v1285
      %1308 = vst.msk [vmem:[#allocation5 + $0x18] sm:$0xff] %vm1304, %v1287
      %1309 = vst.msk [vmem:[#allocation5 + $0x20] sm:$0xff] %vm1304, %v1289
      %1310 = vst.msk [vmem:[#allocation5 + $0x28] sm:$0xff] %vm1304, %v1291
      %1311 = vst.msk [vmem:[#allocation5 + $0x30] sm:$0xff] %vm1304, %v1293
      %1312 = vst.msk [vmem:[#allocation5 + $0x38] sm:$0xff] %vm1304, %v1295
      %v1313 = vld [vmem:[%s1214 + $0x2] sm:$0xff]
      %v1314 = vld [vmem:[%s1214 + $0x12] sm:$0xff]
      %v1315 = vld [vmem:[%s1214 + $0x22] sm:$0xff]
      %v1316 = vld [vmem:[%s1214 + $0x32] sm:$0xff]
      %v1317 = vld [vmem:[%s1214 + $0x42] sm:$0xff]
      %v1318 = vld [vmem:[%s1214 + $0x52] sm:$0xff]
      %v1319 = vld [vmem:[%s1214 + $0x62] sm:$0xff]
      %v1320 = vld [vmem:[%s1214 + $0x72] sm:$0xff]
      %1329 = vrot.lane.b32.xlu0 %v1313, 64
      %v1330 = vpop.permute.xlu0 %1329
      %1331 = vrot.lane.b32.xlu0 %v1314, 64
      %v1332 = vpop.permute.xlu0 %1331
      %1333 = vrot.lane.b32.xlu0 %v1315, 64
      %v1334 = vpop.permute.xlu0 %1333
      %1335 = vrot.lane.b32.xlu0 %v1316, 64
      %v1336 = vpop.permute.xlu0 %1335
      %1337 = vrot.lane.b32.xlu0 %v1317, 64
      %v1338 = vpop.permute.xlu0 %1337
      %1339 = vrot.lane.b32.xlu0 %v1318, 64
      %v1340 = vpop.permute.xlu0 %1339
      %1341 = vrot.lane.b32.xlu0 %v1319, 64
      %v1342 = vpop.permute.xlu0 %1341
      %1343 = vrot.lane.b32.xlu0 %v1320, 64
      %v1344 = vpop.permute.xlu0 %1343
      %vm1353 = vcmask 589312
      %1354 = vst.msk [vmem:[#allocation5] sm:$0xff] %vm1353, %v1330
      %1355 = vst.msk [vmem:[#allocation5 + $0x8] sm:$0xff] %vm1353, %v1332
      %1356 = vst.msk [vmem:[#allocation5 + $0x10] sm:$0xff] %vm1353, %v1334
      %1357 = vst.msk [vmem:[#allocation5 + $0x18] sm:$0xff] %vm1353, %v1336
      %1358 = vst.msk [vmem:[#allocation5 + $0x20] sm:$0xff] %vm1353, %v1338
      %1359 = vst.msk [vmem:[#allocation5 + $0x28] sm:$0xff] %vm1353, %v1340
      %1360 = vst.msk [vmem:[#allocation5 + $0x30] sm:$0xff] %vm1353, %v1342
      %1361 = vst.msk [vmem:[#allocation5 + $0x38] sm:$0xff] %vm1353, %v1344
      %v1362 = vld [vmem:[%s3] sm:$0xff]
      %v1363 = vld [vmem:[#allocation5] sm:$0xff]
      %v1364 = vld [vmem:[#allocation5 + $0x8] sm:$0xff]
      %v1365 = vld [vmem:[#allocation5 + $0x10] sm:$0xff]
      %v1366 = vld [vmem:[#allocation5 + $0x18] sm:$0xff]
      %v1367 = vld [vmem:[#allocation5 + $0x20] sm:$0xff]
      %v1368 = vld [vmem:[#allocation5 + $0x28] sm:$0xff]
      %v1369 = vld [vmem:[#allocation5 + $0x30] sm:$0xff]
      %v1370 = vld [vmem:[#allocation5 + $0x38] sm:$0xff]
      %v1371 = vld [vmem:[%s4] sm:$0xff]
      %1373 = vset.pattern.permute.xlu0 0
      %1374 = vperm.xlu0 %1373, %v1371
      %v1375 = vpop.permute.xlu0 %1374
      %vm1377 = vcmask 588800
      %v1379 = vsel %vm1377, %v1362, 0
      %v1382 = vsel %vm1377, %v1363, 0
      %v1385 = vsel %vm1377, %v1364, 0
      %v1388 = vsel %vm1377, %v1365, 0
      %v1391 = vsel %vm1377, %v1366, 0
      %v1394 = vsel %vm1377, %v1367, 0
      %v1397 = vsel %vm1377, %v1368, 0
      %v1400 = vsel %vm1377, %v1369, 0
      %v1403 = vsel %vm1377, %v1370, 0
      %1405 = vmatprep.subr.mxu0 0.0
      %1406 = vmatpush1.xpose.msra.mxu0 %v1382
      %1407 = vmatprep.subr.mxu0 0.0
      %1408 = vmatpush1.xpose.msra.mxu0 %v1385
      %1409 = vmatprep.subr.mxu0 0.0
      %1410 = vmatpush1.xpose.msra.mxu0 %v1388
      %1411 = vmatprep.subr.mxu0 0.0
      %1412 = vmatpush1.xpose.msra.mxu0 %v1391
      %1413 = vmatprep.subr.mxu0 0.0
      %1414 = vmatpush1.xpose.msra.mxu0 %v1394
      %1415 = vmatprep.subr.mxu0 0.0
      %1416 = vmatpush1.xpose.msra.mxu0 %v1397
      %1417 = vmatprep.subr.mxu0 0.0
      %1418 = vmatpush1.xpose.msra.mxu0 %v1400
      %1419 = vmatprep.subr.mxu0 0.0
      %1420 = vmatpush1.xpose.msra.mxu0 %v1403
      %1421 = vmatprep.subr.mxu0 0.0
      %1422 = vmatpush1.xpose.msra.mxu0 0.0
      %1423 = vmatprep.subr.mxu0 0.0
      %1424 = vmatpush1.xpose.msra.mxu0 0.0
      %1425 = vmatprep.subr.mxu0 0.0
      %1426 = vmatpush1.xpose.msra.mxu0 0.0
      %1427 = vmatprep.subr.mxu0 0.0
      %1428 = vmatpush1.xpose.msra.mxu0 0.0
      %1429 = vmatprep.subr.mxu0 0.0
      %1430 = vmatpush1.xpose.msra.mxu0 0.0
      %1431 = vmatprep.subr.mxu0 0.0
      %1432 = vmatpush1.xpose.msra.mxu0 0.0
      %1433 = vmatprep.subr.mxu0 0.0
      %1434 = vmatpush1.xpose.msra.mxu0 0.0
      %1435 = vmatprep.subr.mxu0 0.0
      %1436 = vmatpush1.xpose.msra.mxu0 0.0
      %1437 = vmatprep.subr.mxu0 0.0
      %1438 = vmatpush1.xpose.msra.mxu0 0.0
      %1439 = vmatprep.subr.mxu0 0.0
      %1440 = vmatpush1.xpose.msra.mxu0 0.0
      %1441 = vmatprep.subr.mxu0 0.0
      %1442 = vmatpush1.xpose.msra.mxu0 0.0
      %1443 = vmatprep.subr.mxu0 0.0
      %1444 = vmatpush1.xpose.msra.mxu0 0.0
      %1445 = vmatprep.subr.mxu0 0.0
      %1446 = vmatpush1.xpose.msra.mxu0 0.0
      %1447 = vmatprep.subr.mxu0 0.0
      %1448 = vmatpush1.xpose.msra.mxu0 0.0
      %1449 = vmatprep.subr.mxu0 0.0
      %1450 = vmatpush1.xpose.msra.mxu0 0.0
      %1451 = vmatprep.subr.mxu0 0.0
      %1452 = vmatpush1.xpose.msra.mxu0 0.0
      %1453 = vmatprep.subr.mxu0 0.0
      %1454 = vmatpush1.xpose.msra.mxu0 0.0
      %1455 = vmatprep.subr.mxu0 0.0
      %1456 = vmatpush1.xpose.msra.mxu0 0.0
      %1457 = vmatprep.subr.mxu0 0.0
      %1458 = vmatpush1.xpose.msra.mxu0 0.0
      %1459 = vmatprep.subr.mxu0 0.0
      %1460 = vmatpush1.xpose.msra.mxu0 0.0
      %1461 = vmatprep.subr.mxu0 0.0
      %1462 = vmatpush1.xpose.msra.mxu0 0.0
      %1463 = vmatprep.subr.mxu0 0.0
      %1464 = vmatpush1.xpose.msra.mxu0 0.0
      %1465 = vmatprep.subr.mxu0 0.0
      %1466 = vmatpush1.xpose.msra.mxu0 0.0
      %1467 = vmatprep.subr.mxu0 0.0
      %1468 = vmatpush1.xpose.msra.mxu0 0.0
      %1469 = vmatprep.mubr.f32.mxu0 0.0
      %1470 = vmatmul.mubr.f32.gmra.mrb[0].mxu0 %v1379
      %v1471 = vpop.f32.mrb[0].mxu0
      %v1472 = vadd.f32 %v1375, %v1471
      %v1473 = vpop.f32.mrb[0].mxu0
      %1474 = vdwg.mxu0
      %v1475 = vmul.f32 %v1472, 0.5
      %v1476 = vmul.f32 %v1472, 0.70710677
      %v1477 = verf.f32.pop %v1476
      %v1478 = vadd.f32 %v1477, 1.0
      %v1479 = vmul.f32 %v1475, %v1478
      %vm1480 = vcmask 523264
      %1481 = vst.msk [vmem:[%s222] sm:$0xff] %vm1480, %v1479
      %p1482 = scmp.lt.s32.totalorder %s16, 1
      %s1483 = scalar_select %p1482, %s16, 1
      %s1484 = smul.addr %s1483, 8
      %s1485 = scalar_lea.vmem %s5, %s1484
      // Predicated region
      $region41: #{down_forward.1} parent=39 // pred_check
        %p1486 = pneg %p144
      $region42: #{down_forward.1} parent=39 // pred_check_branch
        %1488 = sbr.rel (%p1486) target = $region44
      $region43: #{down_forward.1} parent=39 // pred_region
        _
      $region44: #{down_forward.1} parent=39 // pred_fallthru
        _
    $region40: #{down_forward.1} parent=5 // pred_fallthru
      _
    %p1489 = scmp.le.s32.totalorder 2, %s11
    // Predicated region
    $region45: #{down_forward.1} parent=5 // pred_check
      %p1490 = pneg %p1489
    $region46: #{down_forward.1} parent=5 // pred_check_branch
      %1492 = sbr.rel (%p1490) target = $region48
    $region47: #{down_forward.1} parent=5 // pred_region
      %s1493 = ssub.s32 %s11, 2
      // Predicated region
      $region49: #{down_forward.1} parent=47 // pred_check
        %p1494 = pneg %p150
      $region50: #{down_forward.1} parent=47 // pred_check_branch
        %1496 = sbr.rel (%p1494) target = $region52
      $region51: #{down_forward.1} parent=47 // pred_region
        %p1497 = scmp.lt.s32.totalorder %s17, 1
        %s1498 = scalar_select %p1497, %s17, 1
        %s1499 = smul.addr %s1498, 8
        %s1500 = scalar_lea.vmem %s5, %s1499
      $region52: #{down_forward.1} parent=47 // pred_fallthru
        _
    $region48: #{down_forward.1} parent=5 // pred_fallthru
      _
  $region6: #{down_forward.1} parent=0 // loop_footer
    %s15 = sadd.s32 1, %s11
  $region7: #{down_forward.1} parent=0 // loop_footer_branch
    %10 = sbr.rel target = $region3
  $region8: #{down_forward.1} parent=0 // loop_exit
    _

</llo_original>
